<compile_context>
chip_gen: v6e
topology: v6e:2x2x1
jax: 0.10.0
libtpu: 0.0.40
codegen_flags: <defaults>
</compile_context>

<pallas_src>
import functools

import jax
import jax.numpy as jnp
from jax.experimental import pallas as pl
from jax.experimental.pallas import tpu as pltpu

LANE = 128
SUBLANE = 8


def _round_up(x, m):
    return ((x + m - 1) // m) * m


def mlp_kernel(x_ref, w1_ref, b1_ref, w2_ref, b2_ref, w3_ref, b3_ref, o_ref):
    # Cast the activation tile f32 -> bf16 on the VPU (cheap, hidden under DMA).
    x = x_ref[...].astype(jnp.bfloat16)
    # Layer 1: (TB, K) bf16 @ (K, H) bf16 -> f32 accum, +bias, ReLU
    h1 = jnp.dot(x, w1_ref[...], preferred_element_type=jnp.float32)
    h1 = jnp.maximum(h1 + b1_ref[...], 0.0).astype(jnp.bfloat16)
    # Layer 2: (TB, H) bf16 @ (H, H) bf16 -> f32 accum, +bias, ReLU
    h2 = jnp.dot(h1, w2_ref[...], preferred_element_type=jnp.float32)
    h2 = jnp.maximum(h2 + b2_ref[...], 0.0).astype(jnp.bfloat16)
    # Layer 3 (logits): (TB, H) bf16 @ (H, OUT_pad) bf16 -> f32 accum, +bias
    logits = jnp.dot(h2, w3_ref[...], preferred_element_type=jnp.float32)
    o_ref[...] = (logits + b3_ref[...]).astype(o_ref.dtype)


def prepare_params(params):
    """One-time cast/pad of weights for the kernel (hoisted out of forward)."""
    w1, b1, w2, b2, w3, b3 = params
    K, H = w1.shape
    OUT = w3.shape[1]
    OUT_pad = _round_up(OUT, LANE)                     # e.g. 10 -> 128
    w1_p = w1.astype(jnp.bfloat16)                     # (K, H)
    w2_p = w2.astype(jnp.bfloat16)                     # (H, H)
    w3_p = jnp.zeros((H, OUT_pad), jnp.bfloat16).at[:, :OUT].set(
        w3.astype(jnp.bfloat16))                       # zero-padded cols (exact)
    b1_p = b1.reshape(1, H).astype(jnp.float32)
    b2_p = b2.reshape(1, H).astype(jnp.float32)
    b3_p = jnp.zeros((1, OUT_pad), jnp.float32).at[:, :OUT].set(
        b3.reshape(1, OUT).astype(jnp.float32))
    return (w1_p, b1_p, w2_p, b2_p, w3_p, b3_p)


def _choose_batch_tile(B8, batch_tile):
    tb = _round_up(min(batch_tile, B8), SUBLANE)
    # Prefer >= 2 "parallel" grid steps so both v7x TensorCores get work
    # (no effect on correctness; harmless on v5e/v6e).
    if B8 // tb < 2 and B8 >= 2 * SUBLANE:
        tb = _round_up(pl.cdiv(B8, 2), SUBLANE)
    return tb


@functools.partial(jax.jit, static_argnames=("output_size", "batch_tile"))
def mymodel_forward(x_nchw, prepared, *, output_size, batch_tile=128):
    """x_nchw: (B, C, H, W) float32. Returns logits (B, output_size) float32."""
    w1_p, b1_p, w2_p, b2_p, w3_p, b3_p = prepared
    B = x_nchw.shape[0]
    x_flat = x_nchw.reshape(B, -1)                     # nn.Flatten(), stays f32
    K = x_flat.shape[1]                                # input_size
    H = w1_p.shape[1]                                  # hidden (512)
    OUT_pad = w3_p.shape[1]                            # lane-padded output

    # Batch padding / tiling (tile rows must be a multiple of 8).
    B8 = _round_up(B, SUBLANE)
    TB = _choose_batch_tile(B8, batch_tile)
    B_pad = _round_up(B8, TB)
    if B_pad != B:
        # Zero rows -> garbage ReLU(bias) rows, discarded by the final slice.
        x_flat = jnp.pad(x_flat, ((0, B_pad - B), (0, 0)))
    grid = (B_pad // TB,)

    flops = 2 * B_pad * (K * H + H * H + H * OUT_pad)
    bytes_accessed = (
        B_pad * K * 4                                  # x tiles (f32)
        + (K * H + H * H + H * OUT_pad) * 2            # bf16 weights (resident)
        + (2 * H + OUT_pad) * 4                        # f32 biases
        + B_pad * OUT_pad * 4)                         # f32 logits writeback

    out = pl.pallas_call(
        mlp_kernel,
        out_shape=jax.ShapeDtypeStruct((B_pad, OUT_pad), jnp.float32),
        grid=grid,
        in_specs=[
            # activations: stream one batch tile per grid step; last block dim
            # equals the full array dim (K), which satisfies the (8,128) rule.
            pl.BlockSpec((TB, K), lambda i: (i, 0)),
            pl.BlockSpec((K, H), lambda i: (0, 0)),        # w1: VMEM-resident
            pl.BlockSpec((1, H), lambda i: (0, 0)),        # b1
            pl.BlockSpec((H, H), lambda i: (0, 0)),        # w2
            pl.BlockSpec((1, H), lambda i: (0, 0)),        # b2
            pl.BlockSpec((H, OUT_pad), lambda i: (0, 0)),  # w3 (lane-padded)
            pl.BlockSpec((1, OUT_pad), lambda i: (0, 0)),  # b3 (lane-padded)
        ],
        out_specs=pl.BlockSpec((TB, OUT_pad), lambda i: (i, 0)),
        compiler_params=pltpu.CompilerParams(
            dimension_semantics=("parallel",)),
        cost_estimate=pl.CostEstimate(
            flops=flops, transcendentals=0, bytes_accessed=bytes_accessed),
    )(x_flat, w1_p, b1_p, w2_p, b2_p, w3_p, b3_p)

    return out[:B, :output_size]


def init_params(key, input_size, hidden, output_size):
    """Deterministic synthetic init (PyTorch-Linear-like uniform fan-in), f32."""
    ks = jax.random.split(key, 6)

    def lin(kw, kb, fan_in, fan_out):
        bound = 1.0 / jnp.sqrt(fan_in)
        # stored as (in, out) == PyTorch weight.T
        w = jax.random.uniform(kw, (fan_in, fan_out), jnp.float32, -bound, bound)
        b = jax.random.uniform(kb, (1, fan_out), jnp.float32, -bound, bound)
        return w, b

    w1, b1 = lin(ks[0], ks[1], input_size, hidden)
    w2, b2 = lin(ks[2], ks[3], hidden, hidden)
    w3, b3 = lin(ks[4], ks[5], hidden, output_size)
    return (w1, b1, w2, b2, w3, b3)


if __name__ == "__main__":
    key = jax.random.PRNGKey(0)
    k_x, k_p = jax.random.split(key)

    # Small Fashion-MNIST-like shapes; hidden=512 is fixed by the module.
    B, C, Himg, Wimg = 16, 1, 28, 28
    input_size = C * Himg * Wimg     # 784
    hidden = 512
    output_size = 10

    x = jax.random.normal(k_x, (B, C, Himg, Wimg), dtype=jnp.float32)
    params = init_params(k_p, input_size, hidden, output_size)

    # One-time weight prep (padded bf16 weights reused across every call).
    prepared = jax.tree.map(jax.block_until_ready, prepare_params(params))

    logits = mymodel_forward(x, prepared, output_size=output_size)
    jax.block_until_ready(logits)
    assert logits.shape == (B, output_size)

    # Pure-JAX reference with matching bf16-operand / f32-accumulation numerics.
    w1, b1, w2, b2, w3, b3 = params
    xf = x.reshape(B, -1).astype(jnp.bfloat16)
    r1 = jnp.maximum(
        jnp.dot(xf, w1.astype(jnp.bfloat16), preferred_element_type=jnp.float32)
        + b1, 0.0).astype(jnp.bfloat16)
    r2 = jnp.maximum(
        jnp.dot(r1, w2.astype(jnp.bfloat16), preferred_element_type=jnp.float32)
        + b2, 0.0).astype(jnp.bfloat16)
    ref = jnp.dot(r2, w3.astype(jnp.bfloat16),
                  preferred_element_type=jnp.float32) + b3
    assert jnp.allclose(logits, ref, atol=2e-2, rtol=2e-2)

    print("KERNEL_OK")
</pallas_src>

<mosaic_0001>
module attributes {stable_mosaic.version = 11 : i64} {
  func.func @mlp_kernel(%arg0: i32, %arg1: memref<8x784xf32, #tpu.memory_space<vmem>>, %arg2: memref<784x512xbf16, #tpu.memory_space<vmem>>, %arg3: memref<1x512xf32, #tpu.memory_space<vmem>>, %arg4: memref<512x512xbf16, #tpu.memory_space<vmem>>, %arg5: memref<1x512xf32, #tpu.memory_space<vmem>>, %arg6: memref<512x128xbf16, #tpu.memory_space<vmem>>, %arg7: memref<1x128xf32, #tpu.memory_space<vmem>>, %arg8: memref<8x128xf32, #tpu.memory_space<vmem>>) attributes {dimension_semantics = [#tpu.dimension_semantics<parallel>], iteration_bounds = array<i64: 2>, scalar_prefetch = 0 : i64, scratch_operands = 0 : i64, tpu.core_type = #tpu.core_type<tc>, window_params = [{transform_indices = @transform_0, window_bounds = array<i64: 8, 784>}, {pipeline_mode = #tpu.pipeline_mode<synchronous>, transform_indices = @transform_1, window_bounds = array<i64: 784, 512>}, {pipeline_mode = #tpu.pipeline_mode<synchronous>, transform_indices = @transform_2, window_bounds = array<i64: 1, 512>}, {pipeline_mode = #tpu.pipeline_mode<synchronous>, transform_indices = @transform_3, window_bounds = array<i64: 512, 512>}, {pipeline_mode = #tpu.pipeline_mode<synchronous>, transform_indices = @transform_4, window_bounds = array<i64: 1, 512>}, {pipeline_mode = #tpu.pipeline_mode<synchronous>, transform_indices = @transform_5, window_bounds = array<i64: 512, 128>}, {pipeline_mode = #tpu.pipeline_mode<synchronous>, transform_indices = @transform_6, window_bounds = array<i64: 1, 128>}, {transform_indices = @transform_7, window_bounds = array<i64: 8, 128>}]} {
    %c0 = arith.constant 0 : index
    %c0_0 = arith.constant 0 : index
    %0 = vector.load %arg1[%c0, %c0_0] : memref<8x784xf32, #tpu.memory_space<vmem>>, vector<8x784xf32>
    %1 = arith.truncf %0 : vector<8x784xf32> to vector<8x784xbf16>
    %c0_1 = arith.constant 0 : index
    %c0_2 = arith.constant 0 : index
    %2 = vector.load %arg2[%c0_1, %c0_2] : memref<784x512xbf16, #tpu.memory_space<vmem>>, vector<784x512xbf16>
    %cst = arith.constant dense<0.000000e+00> : vector<8x512xf32>
    %3 = tpu.matmul %1, %2, %cst {dimension_numbers = #tpu.dot_dimension_numbers<[1], [0], [0], [1], [0, 0, 1, 1], [], []>} : vector<8x784xbf16>, vector<784x512xbf16>, vector<8x512xf32> -> vector<8x512xf32>
    %c0_3 = arith.constant 0 : index
    %c0_4 = arith.constant 0 : index
    %4 = vector.load %arg3[%c0_3, %c0_4] : memref<1x512xf32, #tpu.memory_space<vmem>>, vector<1x512xf32>
    %5 = vector.broadcast %4 : vector<1x512xf32> to vector<8x512xf32>
    %6 = arith.addf %3, %5 : vector<8x512xf32>
    %cst_5 = arith.constant 0.000000e+00 : f32
    %7 = vector.broadcast %cst_5 : f32 to vector<8x512xf32>
    %8 = arith.maximumf %6, %7 : vector<8x512xf32>
    %9 = arith.truncf %8 : vector<8x512xf32> to vector<8x512xbf16>
    %c0_6 = arith.constant 0 : index
    %c0_7 = arith.constant 0 : index
    %10 = vector.load %arg4[%c0_6, %c0_7] : memref<512x512xbf16, #tpu.memory_space<vmem>>, vector<512x512xbf16>
    %cst_8 = arith.constant dense<0.000000e+00> : vector<8x512xf32>
    %11 = tpu.matmul %9, %10, %cst_8 {dimension_numbers = #tpu.dot_dimension_numbers<[1], [0], [0], [1], [0, 0, 1, 1], [], []>} : vector<8x512xbf16>, vector<512x512xbf16>, vector<8x512xf32> -> vector<8x512xf32>
    %c0_9 = arith.constant 0 : index
    %c0_10 = arith.constant 0 : index
    %12 = vector.load %arg5[%c0_9, %c0_10] : memref<1x512xf32, #tpu.memory_space<vmem>>, vector<1x512xf32>
    %13 = vector.broadcast %12 : vector<1x512xf32> to vector<8x512xf32>
    %14 = arith.addf %11, %13 : vector<8x512xf32>
    %cst_11 = arith.constant 0.000000e+00 : f32
    %15 = vector.broadcast %cst_11 : f32 to vector<8x512xf32>
    %16 = arith.maximumf %14, %15 : vector<8x512xf32>
    %17 = arith.truncf %16 : vector<8x512xf32> to vector<8x512xbf16>
    %c0_12 = arith.constant 0 : index
    %c0_13 = arith.constant 0 : index
    %18 = vector.load %arg6[%c0_12, %c0_13] : memref<512x128xbf16, #tpu.memory_space<vmem>>, vector<512x128xbf16>
    %cst_14 = arith.constant dense<0.000000e+00> : vector<8x128xf32>
    %19 = tpu.matmul %17, %18, %cst_14 {dimension_numbers = #tpu.dot_dimension_numbers<[1], [0], [0], [1], [0, 0, 1, 1], [], []>} : vector<8x512xbf16>, vector<512x128xbf16>, vector<8x128xf32> -> vector<8x128xf32>
    %c0_15 = arith.constant 0 : index
    %c0_16 = arith.constant 0 : index
    %20 = vector.load %arg7[%c0_15, %c0_16] : memref<1x128xf32, #tpu.memory_space<vmem>>, vector<1x128xf32>
    %21 = vector.broadcast %20 : vector<1x128xf32> to vector<8x128xf32>
    %22 = arith.addf %19, %21 : vector<8x128xf32>
    %c0_17 = arith.constant 0 : index
    %c0_18 = arith.constant 0 : index
    %23 = vector.load %arg8[%c0_17, %c0_18] : memref<8x128xf32, #tpu.memory_space<vmem>>, vector<8x128xf32>
    tpu.vector_store %arg8[%c0_17, %c0_18], %22 {strides = array<i32>} : memref<8x128xf32, #tpu.memory_space<vmem>>, vector<8x128xf32>,
    return
  }
  func.func @transform_0(%arg0: i32) -> (i32, i32) {
    %c0_i32 = arith.constant 0 : i32
    %c0_i32_0 = arith.constant 0 : i32
    return %arg0, %c0_i32 : i32, i32
  }
  func.func @transform_1(%arg0: i32) -> (i32, i32) {
    %c0_i32 = arith.constant 0 : i32
    %c0_i32_0 = arith.constant 0 : i32
    %c0_i32_1 = arith.constant 0 : i32
    return %c0_i32, %c0_i32_0 : i32, i32
  }
  func.func @transform_2(%arg0: i32) -> (i32, i32) {
    %c0_i32 = arith.constant 0 : i32
    %c0_i32_0 = arith.constant 0 : i32
    %c0_i32_1 = arith.constant 0 : i32
    return %c0_i32, %c0_i32_0 : i32, i32
  }
  func.func @transform_3(%arg0: i32) -> (i32, i32) {
    %c0_i32 = arith.constant 0 : i32
    %c0_i32_0 = arith.constant 0 : i32
    %c0_i32_1 = arith.constant 0 : i32
    return %c0_i32, %c0_i32_0 : i32, i32
  }
  func.func @transform_4(%arg0: i32) -> (i32, i32) {
    %c0_i32 = arith.constant 0 : i32
    %c0_i32_0 = arith.constant 0 : i32
    %c0_i32_1 = arith.constant 0 : i32
    return %c0_i32, %c0_i32_0 : i32, i32
  }
  func.func @transform_5(%arg0: i32) -> (i32, i32) {
    %c0_i32 = arith.constant 0 : i32
    %c0_i32_0 = arith.constant 0 : i32
    %c0_i32_1 = arith.constant 0 : i32
    return %c0_i32, %c0_i32_0 : i32, i32
  }
  func.func @transform_6(%arg0: i32) -> (i32, i32) {
    %c0_i32 = arith.constant 0 : i32
    %c0_i32_0 = arith.constant 0 : i32
    %c0_i32_1 = arith.constant 0 : i32
    return %c0_i32, %c0_i32_0 : i32, i32
  }
  func.func @transform_7(%arg0: i32) -> (i32, i32) {
    %c0_i32 = arith.constant 0 : i32
    %c0_i32_0 = arith.constant 0 : i32
    return %arg0, %c0_i32 : i32, i32
  }
}

</mosaic_0001>

<llo_original>
// kernel: mymodel_forward.1
$region0: #{mymodel_forward.1}
  #allocation0 [shape = 'u32[]', space=smem, size = 0x4, offset = 0x4, fixed_abs, tag = 'smem constant byte address 0x4 - core index']
  #allocation1 [shape = 'u32[144,128]{1,0:T(1,128)}', space=vmem, size = 0x12000, scoped, tag = 'internal scratch']
  %s0 = inlined_call_operand.vmem [shape: f32[16,784], index: 0, kind: input, shape index: {}]
  %s1 = inlined_call_operand.vmem [shape: bf16[784,512], index: 1, kind: input, shape index: {}]
  %s2 = inlined_call_operand.vmem [shape: f32[1,512], index: 2, kind: input, shape index: {}]
  %s3 = inlined_call_operand.hbm [shape: bf16[512,512], index: 3, kind: input, shape index: {}]
  %s4 = inlined_call_operand.vmem [shape: f32[1,512], index: 4, kind: input, shape index: {}]
  %s5 = inlined_call_operand.hbm [shape: bf16[512,128], index: 5, kind: input, shape index: {}]
  %s6 = inlined_call_operand.vmem [shape: f32[1,128], index: 6, kind: input, shape index: {}]
  %s7 = inlined_call_operand.hbm [shape: f32[16,128], index: 7, kind: output, shape index: {}]
  %s8 = sld [smem:[#allocation0]]
  $region69: #{mymodel_forward.1} parent=0
    _
  %s10 = ssub.s32 1, %s8
  %s11 = scalar_select 0, %s10, %s8
  $region1: #{mymodel_forward.1} parent=0
    #allocation2 [shape = 'u8[524288]{0}', space=vmem, size = 0x80000, scoped, tag = 'input window, operand 3, single buffered']
    #allocation3 [shape = 's32[2]{0}', space=sflag, size = 0x8, scoped, tag = 'scoped memory for mymodel_forward.1']
    #allocation4 [shape = 's32[2]{0}', space=sflag, size = 0x8, scoped, tag = 'scoped memory for mymodel_forward.1']
    #allocation5 [shape = 'u8[131072]{0}', space=vmem, size = 0x20000, scoped, tag = 'input window, operand 5, single buffered']
    #allocation6 [shape = 's32[1]{0}', space=sflag, size = 0x4, scoped, tag = 'scoped memory for mymodel_forward.1']
    #allocation7 [shape = 'u8[8192]{0}', space=vmem, size = 0x2000, scoped, tag = 'output window, operand 0']
    %12 = vsyncpa [#allocation3], 0
    %13 = vsyncpa [#allocation6], 0
    %14 = vsyncpa [#allocation4], 0
    %s15 = scalar_lea.sflag [#allocation4], 1
    %16 = vsyncpa %s15, 0
    loop: start=0, step=1, limit=4
    $region2: #{mymodel_forward.1} parent=1 // loop_pre_header
      _
    $region3: #{mymodel_forward.1} parent=1 // loop_header
      %s18 = sphi 0, %s22
      %p19 = scmp.ge.s32.totalorder %s18, 4
      %s28 = sphi 0, %s30
      %s31 = sphi 0, %s28
      %s32 = sphi 0, %s31
      %s48 = sphi 0, %s32
      %s52 = sphi 0, %s52
      %s54 = sphi 0, %s52
      %s55 = sphi 0, %s54
      %s69 = sphi 0, %s55
      %s73 = sphi 0, %s73
      %s75 = sphi 0, %s73
      %s76 = sphi 0, %s75
      %s90 = sphi 0, %s76
      %s94 = sphi 0, %s94
      %s96 = sphi 0, %s94
      %s97 = sphi 0, %s96
      %s111 = sphi 0, %s97
      %s115 = sphi 0, %s115
      %s117 = sphi 0, %s115
      %s118 = sphi 0, %s117
      %s132 = sphi 0, %s118
      %s136 = sphi 0, %s136
      %s138 = sphi 0, %s136
      %s139 = sphi 0, %s138
      %s153 = sphi 0, %s139
      %s157 = sphi 0, %s157
      %s159 = sphi 0, %s157
      %s160 = sphi 0, %s159
      %s174 = sphi 0, %s160
      %s180 = sphi 0, %s182
      %s183 = sphi 0, %s180
      %s184 = sphi 0, %s183
      %s200 = sphi 0, %s184
    $region4: #{mymodel_forward.1} parent=1 // loop_header_branch
      %21 = sbr.rel (%p19) target = $region8
    $region5: #{mymodel_forward.1} parent=1 // loop_body
      %s23 = ssub.s32 %s18, 1
      %s24 = ssub.s32 %s18, 2
      %s25 = sadd.s32 %s18, 1
      %s26 = ssub.s32 %s18, %s25
      %p27 = scmp.eq.s32.totalorder %s26, 0
      %s29 = sadd.s32 %s28, 1
      %s30 = scalar_select %p27, %s28, %s29
      %p33 = pneg %p27
      %p34 = scmp.eq.s32.totalorder %s18, 1
      %p35 = por %p33, %p34
      %p36 = scmp.ne.s32.totalorder %s28, %s31
      %p37 = scmp.eq.s32.totalorder %s18, 0
      %p38 = por %p36, %p37
      %p39 = scmp.ne.s32.totalorder %s28, %s31
      %p40 = scmp.eq.s32.totalorder %s23, 1
      %p41 = por %p39, %p40
      %p42 = scmp.ne.s32.totalorder %s31, %s32
      %p43 = scmp.eq.s32.totalorder %s23, 0
      %p44 = por %p42, %p43
      %p45 = scmp.ne.s32.totalorder %s31, %s32
      %p46 = scmp.eq.s32.totalorder %s24, 1
      %p47 = por %p45, %p46
      %p49 = scmp.ne.s32.totalorder %s32, %s48
      %p50 = scmp.eq.s32.totalorder %s24, 0
      %p51 = por %p49, %p50
      %s53 = sadd.s32 %s52, 1
      %p56 = scmp.eq.s32.totalorder %s18, 1
      %p57 = scmp.ne.s32.totalorder %s52, %s54
      %p58 = scmp.eq.s32.totalorder %s18, 0
      %p59 = por %p57, %p58
      %p60 = scmp.ne.s32.totalorder %s52, %s54
      %p61 = scmp.eq.s32.totalorder %s23, 1
      %p62 = por %p60, %p61
      %p63 = scmp.ne.s32.totalorder %s54, %s55
      %p64 = scmp.eq.s32.totalorder %s23, 0
      %p65 = por %p63, %p64
      %p66 = scmp.ne.s32.totalorder %s54, %s55
      %p67 = scmp.eq.s32.totalorder %s24, 1
      %p68 = por %p66, %p67
      %p70 = scmp.ne.s32.totalorder %s55, %s69
      %p71 = scmp.eq.s32.totalorder %s24, 0
      %p72 = por %p70, %p71
      %s74 = sadd.s32 %s73, 1
      %p77 = scmp.eq.s32.totalorder %s18, 1
      %p78 = scmp.ne.s32.totalorder %s73, %s75
      %p79 = scmp.eq.s32.totalorder %s18, 0
      %p80 = por %p78, %p79
      %p81 = scmp.ne.s32.totalorder %s73, %s75
      %p82 = scmp.eq.s32.totalorder %s23, 1
      %p83 = por %p81, %p82
      %p84 = scmp.ne.s32.totalorder %s75, %s76
      %p85 = scmp.eq.s32.totalorder %s23, 0
      %p86 = por %p84, %p85
      %p87 = scmp.ne.s32.totalorder %s75, %s76
      %p88 = scmp.eq.s32.totalorder %s24, 1
      %p89 = por %p87, %p88
      %p91 = scmp.ne.s32.totalorder %s76, %s90
      %p92 = scmp.eq.s32.totalorder %s24, 0
      %p93 = por %p91, %p92
      %s95 = sadd.s32 %s94, 1
      %p98 = scmp.eq.s32.totalorder %s18, 1
      %p99 = scmp.ne.s32.totalorder %s94, %s96
      %p100 = scmp.eq.s32.totalorder %s18, 0
      %p101 = por %p99, %p100
      %p102 = scmp.ne.s32.totalorder %s94, %s96
      %p103 = scmp.eq.s32.totalorder %s23, 1
      %p104 = por %p102, %p103
      %p105 = scmp.ne.s32.totalorder %s96, %s97
      %p106 = scmp.eq.s32.totalorder %s23, 0
      %p107 = por %p105, %p106
      %p108 = scmp.ne.s32.totalorder %s96, %s97
      %p109 = scmp.eq.s32.totalorder %s24, 1
      %p110 = por %p108, %p109
      %p112 = scmp.ne.s32.totalorder %s97, %s111
      %p113 = scmp.eq.s32.totalorder %s24, 0
      %p114 = por %p112, %p113
      %s116 = sadd.s32 %s115, 1
      %p119 = scmp.eq.s32.totalorder %s18, 1
      %p120 = scmp.ne.s32.totalorder %s115, %s117
      %p121 = scmp.eq.s32.totalorder %s18, 0
      %p122 = por %p120, %p121
      %p123 = scmp.ne.s32.totalorder %s115, %s117
      %p124 = scmp.eq.s32.totalorder %s23, 1
      %p125 = por %p123, %p124
      %p126 = scmp.ne.s32.totalorder %s117, %s118
      %p127 = scmp.eq.s32.totalorder %s23, 0
      %p128 = por %p126, %p127
      %p129 = scmp.ne.s32.totalorder %s117, %s118
      %p130 = scmp.eq.s32.totalorder %s24, 1
      %p131 = por %p129, %p130
      %p133 = scmp.ne.s32.totalorder %s118, %s132
      %p134 = scmp.eq.s32.totalorder %s24, 0
      %p135 = por %p133, %p134
      %s137 = sadd.s32 %s136, 1
      %p140 = scmp.eq.s32.totalorder %s18, 1
      %p141 = scmp.ne.s32.totalorder %s136, %s138
      %p142 = scmp.eq.s32.totalorder %s18, 0
      %p143 = por %p141, %p142
      %p144 = scmp.ne.s32.totalorder %s136, %s138
      %p145 = scmp.eq.s32.totalorder %s23, 1
      %p146 = por %p144, %p145
      %p147 = scmp.ne.s32.totalorder %s138, %s139
      %p148 = scmp.eq.s32.totalorder %s23, 0
      %p149 = por %p147, %p148
      %p150 = scmp.ne.s32.totalorder %s138, %s139
      %p151 = scmp.eq.s32.totalorder %s24, 1
      %p152 = por %p150, %p151
      %p154 = scmp.ne.s32.totalorder %s139, %s153
      %p155 = scmp.eq.s32.totalorder %s24, 0
      %p156 = por %p154, %p155
      %s158 = sadd.s32 %s157, 1
      %p161 = scmp.eq.s32.totalorder %s18, 1
      %p162 = scmp.ne.s32.totalorder %s157, %s159
      %p163 = scmp.eq.s32.totalorder %s18, 0
      %p164 = por %p162, %p163
      %p165 = scmp.ne.s32.totalorder %s157, %s159
      %p166 = scmp.eq.s32.totalorder %s23, 1
      %p167 = por %p165, %p166
      %p168 = scmp.ne.s32.totalorder %s159, %s160
      %p169 = scmp.eq.s32.totalorder %s23, 0
      %p170 = por %p168, %p169
      %p171 = scmp.ne.s32.totalorder %s159, %s160
      %p172 = scmp.eq.s32.totalorder %s24, 1
      %p173 = por %p171, %p172
      %p175 = scmp.ne.s32.totalorder %s160, %s174
      %p176 = scmp.eq.s32.totalorder %s24, 0
      %p177 = por %p175, %p176
      %s178 = ssub.s32 %s18, %s25
      %p179 = scmp.eq.s32.totalorder %s178, 0
      %s181 = sadd.s32 %s180, 1
      %s182 = scalar_select %p179, %s180, %s181
      %p185 = pneg %p179
      %p186 = scmp.eq.s32.totalorder %s18, 1
      %p187 = por %p185, %p186
      %p188 = scmp.ne.s32.totalorder %s180, %s183
      %p189 = scmp.eq.s32.totalorder %s18, 0
      %p190 = por %p188, %p189
      %p191 = scmp.ne.s32.totalorder %s180, %s183
      %p192 = scmp.eq.s32.totalorder %s23, 1
      %p193 = por %p191, %p192
      %p194 = scmp.ne.s32.totalorder %s183, %s184
      %p195 = scmp.eq.s32.totalorder %s23, 0
      %p196 = por %p194, %p195
      %p197 = scmp.ne.s32.totalorder %s183, %s184
      %p198 = scmp.eq.s32.totalorder %s24, 1
      %p199 = por %p197, %p198
      %p201 = scmp.ne.s32.totalorder %s184, %s200
      %p202 = scmp.eq.s32.totalorder %s24, 0
      %p203 = por %p201, %p202
      %p204 = scmp.le.s32.totalorder 1, %s18
      %p205 = scmp.lt.s32.totalorder %s18, 3
      %p206 = pnand %p204, %p205
      %p207 = pneg %p206
      // Predicated region
      $region9: #{mymodel_forward.1} parent=5 // pred_check
        _
      $region10: #{mymodel_forward.1} parent=5 // pred_check_branch
        %209 = sbr.rel (%p206) target = $region12
      $region11: #{mymodel_forward.1} parent=5 // pred_region
        %s210 = ssub.s32 %s18, 1
        // Predicated region
        $region13: #{mymodel_forward.1} parent=11 // pred_check
          %p211 = pneg %p65
        $region14: #{mymodel_forward.1} parent=11 // pred_check_branch
          %213 = sbr.rel (%p211) target = $region16
        $region15: #{mymodel_forward.1} parent=11 // pred_region
          _
        $region16: #{mymodel_forward.1} parent=11 // pred_fallthru
          _
        // Predicated region
        $region17: #{mymodel_forward.1} parent=11 // pred_check
          %p214 = pneg %p86
        $region18: #{mymodel_forward.1} parent=11 // pred_check_branch
          %216 = sbr.rel (%p214) target = $region20
        $region19: #{mymodel_forward.1} parent=11 // pred_region
          _
        $region20: #{mymodel_forward.1} parent=11 // pred_fallthru
          _
        // Predicated region
        $region21: #{mymodel_forward.1} parent=11 // pred_check
          %p217 = pneg %p107
        $region22: #{mymodel_forward.1} parent=11 // pred_check_branch
          %219 = sbr.rel (%p217) target = $region24
        $region23: #{mymodel_forward.1} parent=11 // pred_region
          %s221 = ssub.s32 16384, 16384
          %222 = vsyncadd [#allocation3], %s221
          %s223 = sshll.u32 [#allocation2], 4
          %s224 = int_to_ptr.vmem [resolvable:$true] %s223
          %229 = dma.hbm_to_vmem [thread:$0]  %s3, 16384, %s224, [#allocation3], 256, 256, 16
        $region24: #{mymodel_forward.1} parent=11 // pred_fallthru
          _
        // Predicated region
        $region25: #{mymodel_forward.1} parent=11 // pred_check
          %p230 = pneg %p128
        $region26: #{mymodel_forward.1} parent=11 // pred_check_branch
          %232 = sbr.rel (%p230) target = $region28
        $region27: #{mymodel_forward.1} parent=11 // pred_region
          _
        $region28: #{mymodel_forward.1} parent=11 // pred_fallthru
          _
        // Predicated region
        $region29: #{mymodel_forward.1} parent=11 // pred_check
          %p233 = pneg %p149
        $region30: #{mymodel_forward.1} parent=11 // pred_check_branch
          %235 = sbr.rel (%p233) target = $region32
        $region31: #{mymodel_forward.1} parent=11 // pred_region
          %s237 = ssub.s32 4096, 4096
          %238 = vsyncadd [#allocation6], %s237
          %s239 = sshll.u32 [#allocation5], 4
          %s240 = int_to_ptr.vmem [resolvable:$true] %s239
          %245 = dma.hbm_to_vmem [thread:$0]  %s5, 4096, %s240, [#allocation6], 64, 64, 4
        $region32: #{mymodel_forward.1} parent=11 // pred_fallthru
          _
        // Predicated region
        $region33: #{mymodel_forward.1} parent=11 // pred_check
          %p246 = pneg %p170
        $region34: #{mymodel_forward.1} parent=11 // pred_check_branch
          %248 = sbr.rel (%p246) target = $region36
        $region35: #{mymodel_forward.1} parent=11 // pred_region
          _
        $region36: #{mymodel_forward.1} parent=11 // pred_fallthru
          _
      $region12: #{mymodel_forward.1} parent=5 // pred_fallthru
        _
      %p249 = scmp.lt.s32.totalorder %s18, 2
      // Predicated region
      $region37: #{mymodel_forward.1} parent=5 // pred_check
        %p250 = pneg %p249
      $region38: #{mymodel_forward.1} parent=5 // pred_check_branch
        %252 = sbr.rel (%p250) target = $region40
      $region39: #{mymodel_forward.1} parent=5 // pred_region
        // Predicated region
        $region41: #{mymodel_forward.1} parent=39 // pred_check
          %p253 = pneg %p38
        $region42: #{mymodel_forward.1} parent=39 // pred_check_branch
          %255 = sbr.rel (%p253) target = $region44
        $region43: #{mymodel_forward.1} parent=39 // pred_region
          %p256 = scmp.lt.s32.totalorder %s18, 1
          %s257 = scalar_select %p256, %s18, 1
          %s258 = smul.addr %s257, 7
          %s259 = smul.addr %s258, 8
          %s260 = scalar_lea.vmem %s0, %s259
        $region44: #{mymodel_forward.1} parent=39 // pred_fallthru
          _
      $region40: #{mymodel_forward.1} parent=5 // pred_fallthru
        _
      %p261 = scmp.le.s32.totalorder 1, %s18
      %p262 = scmp.lt.s32.totalorder %s18, 3
      %p263 = pnand %p261, %p262
      %p264 = pneg %p263
      // Predicated region
      $region45: #{mymodel_forward.1} parent=5 // pred_check
        _
      $region46: #{mymodel_forward.1} parent=5 // pred_check_branch
        %266 = sbr.rel (%p263) target = $region48
      $region47: #{mymodel_forward.1} parent=5 // pred_region
        %s267 = ssub.s32 %s18, 1
        // Predicated region
        $region49: #{mymodel_forward.1} parent=47 // pred_check
          %p268 = pneg %p107
        $region50: #{mymodel_forward.1} parent=47 // pred_check_branch
          %270 = sbr.rel (%p268) target = $region52
        $region51: #{mymodel_forward.1} parent=47 // pred_region
          %271 = dma.done [#allocation3], 16384
        $region52: #{mymodel_forward.1} parent=47 // pred_fallthru
          _
        // Predicated region
        $region53: #{mymodel_forward.1} parent=47 // pred_check
          %p272 = pneg %p149
        $region54: #{mymodel_forward.1} parent=47 // pred_check_branch
          %274 = sbr.rel (%p272) target = $region56
        $region55: #{mymodel_forward.1} parent=47 // pred_region
          %275 = dma.done [#allocation6], 4096
        $region56: #{mymodel_forward.1} parent=47 // pred_fallthru
          _
        %p276 = scmp.lt.s32.totalorder %s23, 1
        %s277 = scalar_select %p276, %s23, 1
        %s278 = smul.addr %s277, 7
        %s279 = smul.addr %s278, 8
        %s280 = scalar_lea.vmem %s0, %s279
        %p281 = pneg %p44
        %p282 = pneg %p41
        %p283 = pneg %p65
        %p284 = pneg %p62
        %p285 = pneg %p86
        %p286 = pneg %p83
        %p287 = pneg %p107
        %p288 = pneg %p104
        %p289 = pneg %p128
        %p290 = pneg %p125
        %p291 = pneg %p149
        %p292 = pneg %p146
        %p293 = pneg %p170
        %p294 = pneg %p167
        %p295 = pneg %p196
        %p296 = pneg %p193
        %s297 = sand.u32 %s183, 1
        %s298 = scalar_lea.sflag [#allocation4], %s297
        %s299 = sand.u32 %s183, 1
        %s300 = smul.addr %s299, 8
        %s301 = scalar_lea.vmem [#allocation7], %s300
        %p302 = scmp.lt.s32.totalorder %s23, 1
        %s303 = scalar_select %p302, %s23, 1
        %s304 = smul.addr %s303, 7
        %s305 = smul.addr %s304, 8
        %s306 = scalar_lea.vmem %s0, %s305
        %v308 = vld [vmem:[%s306] sm:$0xff]
        %v309 = vld [vmem:[%s306 + $0x8] sm:$0xff]
        %v310 = vld [vmem:[%s306 + $0x10] sm:$0xff]
        %v311 = vld [vmem:[%s306 + $0x18] sm:$0xff]
        %v312 = vld [vmem:[%s306 + $0x20] sm:$0xff]
        %v313 = vld [vmem:[%s306 + $0x28] sm:$0xff]
        %v314 = vld [vmem:[%s306 + $0x30] sm:$0xff]
        %v315 = vpack.c.bf16 %v308, %v308
        %v316 = vpack.c.bf16 %v309, %v309
        %v317 = vpack.c.bf16 %v310, %v310
        %v318 = vpack.c.bf16 %v311, %v311
        %v319 = vpack.c.bf16 %v312, %v312
        %v320 = vpack.c.bf16 %v313, %v313
        %v321 = vpack.c.bf16 %v314, %v314
        %v322 = vld [vmem:[%s1] sm:$0xff]
        %v323 = vld [vmem:[%s1 + $0x8] sm:$0xff]
        %v324 = vld [vmem:[%s1 + $0x10] sm:$0xff]
        %v325 = vld [vmem:[%s1 + $0x18] sm:$0xff]
        %v326 = vld [vmem:[%s1 + $0x20] sm:$0xff]
        %v327 = vld [vmem:[%s1 + $0x28] sm:$0xff]
        %v328 = vld [vmem:[%s1 + $0x30] sm:$0xff]
        %v329 = vld [vmem:[%s1 + $0x38] sm:$0xff]
        %v330 = vld [vmem:[%s1 + $0x40] sm:$0xff]
        %v331 = vld [vmem:[%s1 + $0x48] sm:$0xff]
        %v332 = vld [vmem:[%s1 + $0x50] sm:$0xff]
        %v333 = vld [vmem:[%s1 + $0x58] sm:$0xff]
        %v334 = vld [vmem:[%s1 + $0x60] sm:$0xff]
        %v335 = vld [vmem:[%s1 + $0x68] sm:$0xff]
        %v336 = vld [vmem:[%s1 + $0x70] sm:$0xff]
        %v337 = vld [vmem:[%s1 + $0x78] sm:$0xff]
        %v338 = vld [vmem:[%s1 + $0x80] sm:$0xff]
        %v339 = vld [vmem:[%s1 + $0x88] sm:$0xff]
        %v340 = vld [vmem:[%s1 + $0x90] sm:$0xff]
        %v341 = vld [vmem:[%s1 + $0x98] sm:$0xff]
        %v342 = vld [vmem:[%s1 + $0xa0] sm:$0xff]
        %v343 = vld [vmem:[%s1 + $0xa8] sm:$0xff]
        %v344 = vld [vmem:[%s1 + $0xb0] sm:$0xff]
        %v345 = vld [vmem:[%s1 + $0xb8] sm:$0xff]
        %v346 = vld [vmem:[%s1 + $0xc0] sm:$0xff]
        %v347 = vld [vmem:[%s1 + $0xc8] sm:$0xff]
        %v348 = vld [vmem:[%s1 + $0xd0] sm:$0xff]
        %v349 = vld [vmem:[%s1 + $0xd8] sm:$0xff]
        %v350 = vld [vmem:[%s1 + $0xe0] sm:$0xff]
        %v351 = vld [vmem:[%s1 + $0xe8] sm:$0xff]
        %v352 = vld [vmem:[%s1 + $0xf0] sm:$0xff]
        %v353 = vld [vmem:[%s1 + $0xf8] sm:$0xff]
        %v354 = vld [vmem:[%s1 + $0x100] sm:$0xff]
        %v355 = vld [vmem:[%s1 + $0x108] sm:$0xff]
        %v356 = vld [vmem:[%s1 + $0x110] sm:$0xff]
        %v357 = vld [vmem:[%s1 + $0x118] sm:$0xff]
        %v358 = vld [vmem:[%s1 + $0x120] sm:$0xff]
        %v359 = vld [vmem:[%s1 + $0x128] sm:$0xff]
        %v360 = vld [vmem:[%s1 + $0x130] sm:$0xff]
        %v361 = vld [vmem:[%s1 + $0x138] sm:$0xff]
        %v362 = vld [vmem:[%s1 + $0x140] sm:$0xff]
        %v363 = vld [vmem:[%s1 + $0x148] sm:$0xff]
        %v364 = vld [vmem:[%s1 + $0x150] sm:$0xff]
        %v365 = vld [vmem:[%s1 + $0x158] sm:$0xff]
        %v366 = vld [vmem:[%s1 + $0x160] sm:$0xff]
        %v367 = vld [vmem:[%s1 + $0x168] sm:$0xff]
        %v368 = vld [vmem:[%s1 + $0x170] sm:$0xff]
        %v369 = vld [vmem:[%s1 + $0x178] sm:$0xff]
        %v370 = vld [vmem:[%s1 + $0x180] sm:$0xff]
        %v371 = vld [vmem:[%s1 + $0x188] sm:$0xff]
        %v372 = vld [vmem:[%s1 + $0x190] sm:$0xff]
        %v373 = vld [vmem:[%s1 + $0x198] sm:$0xff]
        %v374 = vld [vmem:[%s1 + $0x1a0] sm:$0xff]
        %v375 = vld [vmem:[%s1 + $0x1a8] sm:$0xff]
        %v376 = vld [vmem:[%s1 + $0x1b0] sm:$0xff]
        %v377 = vld [vmem:[%s1 + $0x1b8] sm:$0xff]
        %v378 = vld [vmem:[%s1 + $0x1c0] sm:$0xff]
        %v379 = vld [vmem:[%s1 + $0x1c8] sm:$0xff]
        %v380 = vld [vmem:[%s1 + $0x1d0] sm:$0xff]
        %v381 = vld [vmem:[%s1 + $0x1d8] sm:$0xff]
        %v382 = vld [vmem:[%s1 + $0x1e0] sm:$0xff]
        %v383 = vld [vmem:[%s1 + $0x1e8] sm:$0xff]
        %v384 = vld [vmem:[%s1 + $0x1f0] sm:$0xff]
        %v385 = vld [vmem:[%s1 + $0x1f8] sm:$0xff]
        %v386 = vld [vmem:[%s1 + $0x200] sm:$0xff]
        %v387 = vld [vmem:[%s1 + $0x208] sm:$0xff]
        %v388 = vld [vmem:[%s1 + $0x210] sm:$0xff]
        %v389 = vld [vmem:[%s1 + $0x218] sm:$0xff]
        %v390 = vld [vmem:[%s1 + $0x220] sm:$0xff]
        %v391 = vld [vmem:[%s1 + $0x228] sm:$0xff]
        %v392 = vld [vmem:[%s1 + $0x230] sm:$0xff]
        %v393 = vld [vmem:[%s1 + $0x238] sm:$0xff]
        %v394 = vld [vmem:[%s1 + $0x240] sm:$0xff]
        %v395 = vld [vmem:[%s1 + $0x248] sm:$0xff]
        %v396 = vld [vmem:[%s1 + $0x250] sm:$0xff]
        %v397 = vld [vmem:[%s1 + $0x258] sm:$0xff]
        %v398 = vld [vmem:[%s1 + $0x260] sm:$0xff]
        %v399 = vld [vmem:[%s1 + $0x268] sm:$0xff]
        %v400 = vld [vmem:[%s1 + $0x270] sm:$0xff]
        %v401 = vld [vmem:[%s1 + $0x278] sm:$0xff]
        %v402 = vld [vmem:[%s1 + $0x280] sm:$0xff]
        %v403 = vld [vmem:[%s1 + $0x288] sm:$0xff]
        %v404 = vld [vmem:[%s1 + $0x290] sm:$0xff]
        %v405 = vld [vmem:[%s1 + $0x298] sm:$0xff]
        %v406 = vld [vmem:[%s1 + $0x2a0] sm:$0xff]
        %v407 = vld [vmem:[%s1 + $0x2a8] sm:$0xff]
        %v408 = vld [vmem:[%s1 + $0x2b0] sm:$0xff]
        %v409 = vld [vmem:[%s1 + $0x2b8] sm:$0xff]
        %v410 = vld [vmem:[%s1 + $0x2c0] sm:$0xff]
        %v411 = vld [vmem:[%s1 + $0x2c8] sm:$0xff]
        %v412 = vld [vmem:[%s1 + $0x2d0] sm:$0xff]
        %v413 = vld [vmem:[%s1 + $0x2d8] sm:$0xff]
        %v414 = vld [vmem:[%s1 + $0x2e0] sm:$0xff]
        %v415 = vld [vmem:[%s1 + $0x2e8] sm:$0xff]
        %v416 = vld [vmem:[%s1 + $0x2f0] sm:$0xff]
        %v417 = vld [vmem:[%s1 + $0x2f8] sm:$0xff]
        %v418 = vld [vmem:[%s1 + $0x300] sm:$0xff]
        %v419 = vld [vmem:[%s1 + $0x308] sm:$0xff]
        %v420 = vld [vmem:[%s1 + $0x310] sm:$0xff]
        %v421 = vld [vmem:[%s1 + $0x318] sm:$0xff]
        %v422 = vld [vmem:[%s1 + $0x320] sm:$0xff]
        %v423 = vld [vmem:[%s1 + $0x328] sm:$0xff]
        %v424 = vld [vmem:[%s1 + $0x330] sm:$0xff]
        %v425 = vld [vmem:[%s1 + $0x338] sm:$0xff]
        %v426 = vld [vmem:[%s1 + $0x340] sm:$0xff]
        %v427 = vld [vmem:[%s1 + $0x348] sm:$0xff]
        %v428 = vld [vmem:[%s1 + $0x350] sm:$0xff]
        %v429 = vld [vmem:[%s1 + $0x358] sm:$0xff]
        %v430 = vld [vmem:[%s1 + $0x360] sm:$0xff]
        %v431 = vld [vmem:[%s1 + $0x368] sm:$0xff]
        %v432 = vld [vmem:[%s1 + $0x370] sm:$0xff]
        %v433 = vld [vmem:[%s1 + $0x378] sm:$0xff]
        %v434 = vld [vmem:[%s1 + $0x380] sm:$0xff]
        %v435 = vld [vmem:[%s1 + $0x388] sm:$0xff]
        %v436 = vld [vmem:[%s1 + $0x390] sm:$0xff]
        %v437 = vld [vmem:[%s1 + $0x398] sm:$0xff]
        %v438 = vld [vmem:[%s1 + $0x3a0] sm:$0xff]
        %v439 = vld [vmem:[%s1 + $0x3a8] sm:$0xff]
        %v440 = vld [vmem:[%s1 + $0x3b0] sm:$0xff]
        %v441 = vld [vmem:[%s1 + $0x3b8] sm:$0xff]
        %v442 = vld [vmem:[%s1 + $0x3c0] sm:$0xff]
        %v443 = vld [vmem:[%s1 + $0x3c8] sm:$0xff]
        %v444 = vld [vmem:[%s1 + $0x3d0] sm:$0xff]
        %v445 = vld [vmem:[%s1 + $0x3d8] sm:$0xff]
        %v446 = vld [vmem:[%s1 + $0x3e0] sm:$0xff]
        %v447 = vld [vmem:[%s1 + $0x3e8] sm:$0xff]
        %v448 = vld [vmem:[%s1 + $0x3f0] sm:$0xff]
        %v449 = vld [vmem:[%s1 + $0x3f8] sm:$0xff]
        %v450 = vld [vmem:[%s1 + $0x400] sm:$0xff]
        %v451 = vld [vmem:[%s1 + $0x408] sm:$0xff]
        %v452 = vld [vmem:[%s1 + $0x410] sm:$0xff]
        %v453 = vld [vmem:[%s1 + $0x418] sm:$0xff]
        %v454 = vld [vmem:[%s1 + $0x420] sm:$0xff]
        %v455 = vld [vmem:[%s1 + $0x428] sm:$0xff]
        %v456 = vld [vmem:[%s1 + $0x430] sm:$0xff]
        %v457 = vld [vmem:[%s1 + $0x438] sm:$0xff]
        %v458 = vld [vmem:[%s1 + $0x440] sm:$0xff]
        %v459 = vld [vmem:[%s1 + $0x448] sm:$0xff]
        %v460 = vld [vmem:[%s1 + $0x450] sm:$0xff]
        %v461 = vld [vmem:[%s1 + $0x458] sm:$0xff]
        %v462 = vld [vmem:[%s1 + $0x460] sm:$0xff]
        %v463 = vld [vmem:[%s1 + $0x468] sm:$0xff]
        %v464 = vld [vmem:[%s1 + $0x470] sm:$0xff]
        %v465 = vld [vmem:[%s1 + $0x478] sm:$0xff]
        %v466 = vld [vmem:[%s1 + $0x480] sm:$0xff]
        %v467 = vld [vmem:[%s1 + $0x488] sm:$0xff]
        %v468 = vld [vmem:[%s1 + $0x490] sm:$0xff]
        %v469 = vld [vmem:[%s1 + $0x498] sm:$0xff]
        %v470 = vld [vmem:[%s1 + $0x4a0] sm:$0xff]
        %v471 = vld [vmem:[%s1 + $0x4a8] sm:$0xff]
        %v472 = vld [vmem:[%s1 + $0x4b0] sm:$0xff]
        %v473 = vld [vmem:[%s1 + $0x4b8] sm:$0xff]
        %v474 = vld [vmem:[%s1 + $0x4c0] sm:$0xff]
        %v475 = vld [vmem:[%s1 + $0x4c8] sm:$0xff]
        %v476 = vld [vmem:[%s1 + $0x4d0] sm:$0xff]
        %v477 = vld [vmem:[%s1 + $0x4d8] sm:$0xff]
        %v478 = vld [vmem:[%s1 + $0x4e0] sm:$0xff]
        %v479 = vld [vmem:[%s1 + $0x4e8] sm:$0xff]
        %v480 = vld [vmem:[%s1 + $0x4f0] sm:$0xff]
        %v481 = vld [vmem:[%s1 + $0x4f8] sm:$0xff]
        %v482 = vld [vmem:[%s1 + $0x500] sm:$0xff]
        %v483 = vld [vmem:[%s1 + $0x508] sm:$0xff]
        %v484 = vld [vmem:[%s1 + $0x510] sm:$0xff]
        %v485 = vld [vmem:[%s1 + $0x518] sm:$0xff]
        %v486 = vld [vmem:[%s1 + $0x520] sm:$0xff]
        %v487 = vld [vmem:[%s1 + $0x528] sm:$0xff]
        %v488 = vld [vmem:[%s1 + $0x530] sm:$0xff]
        %v489 = vld [vmem:[%s1 + $0x538] sm:$0xff]
        %v490 = vld [vmem:[%s1 + $0x540] sm:$0xff]
        %v491 = vld [vmem:[%s1 + $0x548] sm:$0xff]
        %v492 = vld [vmem:[%s1 + $0x550] sm:$0xff]
        %v493 = vld [vmem:[%s1 + $0x558] sm:$0xff]
        %v494 = vld [vmem:[%s1 + $0x560] sm:$0xff]
        %v495 = vld [vmem:[%s1 + $0x568] sm:$0xff]
        %v496 = vld [vmem:[%s1 + $0x570] sm:$0xff]
        %v497 = vld [vmem:[%s1 + $0x578] sm:$0xff]
        %v498 = vld [vmem:[%s1 + $0x580] sm:$0xff]
        %v499 = vld [vmem:[%s1 + $0x588] sm:$0xff]
        %v500 = vld [vmem:[%s1 + $0x590] sm:$0xff]
        %v501 = vld [vmem:[%s1 + $0x598] sm:$0xff]
        %v502 = vld [vmem:[%s1 + $0x5a0] sm:$0xff]
        %v503 = vld [vmem:[%s1 + $0x5a8] sm:$0xff]
        %v504 = vld [vmem:[%s1 + $0x5b0] sm:$0xff]
        %v505 = vld [vmem:[%s1 + $0x5b8] sm:$0xff]
        %v506 = vld [vmem:[%s1 + $0x5c0] sm:$0xff]
        %v507 = vld [vmem:[%s1 + $0x5c8] sm:$0xff]
        %v508 = vld [vmem:[%s1 + $0x5d0] sm:$0xff]
        %v509 = vld [vmem:[%s1 + $0x5d8] sm:$0xff]
        %v510 = vld [vmem:[%s1 + $0x5e0] sm:$0xff]
        %v511 = vld [vmem:[%s1 + $0x5e8] sm:$0xff]
        %v512 = vld [vmem:[%s1 + $0x5f0] sm:$0xff]
        %v513 = vld [vmem:[%s1 + $0x5f8] sm:$0xff]
        %v514 = vld [vmem:[%s1 + $0x600] sm:$0xff]
        %v515 = vld [vmem:[%s1 + $0x608] sm:$0xff]
        %v516 = vld [vmem:[%s1 + $0x610] sm:$0xff]
        %v517 = vld [vmem:[%s1 + $0x618] sm:$0xff]
        %v518 = vld [vmem:[%s2] sm:$0xf]
        %v520 = vlaneseq
        %v521 = vshrl.u32 %v520, 7
        %v522 = vsub.s32 0, %v521
        %v523 = vrot.slane %v518, %v522
        %v524 = vlaneseq
        %v525 = vshrl.u32 %v524, 7
        %v526 = vsub.s32 1, %v525
        %v527 = vrot.slane %v518, %v526
        %v528 = vlaneseq
        %v529 = vshrl.u32 %v528, 7
        %v530 = vsub.s32 2, %v529
        %v531 = vrot.slane %v518, %v530
        %v532 = vlaneseq
        %v533 = vshrl.u32 %v532, 7
        %v534 = vsub.s32 3, %v533
        %v535 = vrot.slane %v518, %v534
        %v736 = vunpack.c.l.b16 %v322
        %v737 = vunpack.c.h.b16 %v322
        %v738 = vunpack.c.l.b16 %v323
        %v739 = vunpack.c.h.b16 %v323
        %v740 = vunpack.c.l.b16 %v324
        %v741 = vunpack.c.h.b16 %v324
        %v742 = vunpack.c.l.b16 %v325
        %v743 = vunpack.c.h.b16 %v325
        %v744 = vunpack.c.l.b16 %v326
        %v745 = vunpack.c.h.b16 %v326
        %v746 = vunpack.c.l.b16 %v327
        %v747 = vunpack.c.h.b16 %v327
        %v748 = vunpack.c.l.b16 %v328
        %v749 = vunpack.c.h.b16 %v328
        %v750 = vunpack.c.l.b16 %v329
        %v751 = vunpack.c.h.b16 %v329
        %v752 = vunpack.c.l.b16 %v330
        %v753 = vunpack.c.h.b16 %v330
        %v754 = vunpack.c.l.b16 %v331
        %v755 = vunpack.c.h.b16 %v331
        %v756 = vunpack.c.l.b16 %v332
        %v757 = vunpack.c.h.b16 %v332
        %v758 = vunpack.c.l.b16 %v333
        %v759 = vunpack.c.h.b16 %v333
        %v760 = vunpack.c.l.b16 %v334
        %v761 = vunpack.c.h.b16 %v334
        %v762 = vunpack.c.l.b16 %v335
        %v763 = vunpack.c.h.b16 %v335
        %v764 = vunpack.c.l.b16 %v336
        %v765 = vunpack.c.h.b16 %v336
        %v766 = vunpack.c.l.b16 %v337
        %v767 = vunpack.c.h.b16 %v337
        %v768 = vunpack.c.l.b16 %v338
        %v769 = vunpack.c.h.b16 %v338
        %v770 = vunpack.c.l.b16 %v339
        %v771 = vunpack.c.h.b16 %v339
        %v772 = vunpack.c.l.b16 %v340
        %v773 = vunpack.c.h.b16 %v340
        %v774 = vunpack.c.l.b16 %v341
        %v775 = vunpack.c.h.b16 %v341
        %v776 = vunpack.c.l.b16 %v342
        %v777 = vunpack.c.h.b16 %v342
        %v778 = vunpack.c.l.b16 %v343
        %v779 = vunpack.c.h.b16 %v343
        %v780 = vunpack.c.l.b16 %v344
        %v781 = vunpack.c.h.b16 %v344
        %v782 = vunpack.c.l.b16 %v345
        %v783 = vunpack.c.h.b16 %v345
        %v784 = vunpack.c.l.b16 %v346
        %v785 = vunpack.c.h.b16 %v346
        %v786 = vunpack.c.l.b16 %v347
        %v787 = vunpack.c.h.b16 %v347
        %v788 = vunpack.c.l.b16 %v348
        %v789 = vunpack.c.h.b16 %v348
        %v790 = vunpack.c.l.b16 %v349
        %v791 = vunpack.c.h.b16 %v349
        %v792 = vunpack.c.l.b16 %v350
        %v793 = vunpack.c.h.b16 %v350
        %v794 = vunpack.c.l.b16 %v351
        %v795 = vunpack.c.h.b16 %v351
        %v796 = vunpack.c.l.b16 %v352
        %v797 = vunpack.c.h.b16 %v352
        %v798 = vunpack.c.l.b16 %v353
        %v799 = vunpack.c.h.b16 %v353
        %v800 = vunpack.c.l.b16 %v354
        %v801 = vunpack.c.h.b16 %v354
        %v802 = vunpack.c.l.b16 %v355
        %v803 = vunpack.c.h.b16 %v355
        %v804 = vunpack.c.l.b16 %v356
        %v805 = vunpack.c.h.b16 %v356
        %v806 = vunpack.c.l.b16 %v357
        %v807 = vunpack.c.h.b16 %v357
        %v808 = vunpack.c.l.b16 %v358
        %v809 = vunpack.c.h.b16 %v358
        %v810 = vunpack.c.l.b16 %v359
        %v811 = vunpack.c.h.b16 %v359
        %v812 = vunpack.c.l.b16 %v360
        %v813 = vunpack.c.h.b16 %v360
        %v814 = vunpack.c.l.b16 %v361
        %v815 = vunpack.c.h.b16 %v361
        %v816 = vunpack.c.l.b16 %v362
        %v817 = vunpack.c.h.b16 %v362
        %v818 = vunpack.c.l.b16 %v363
        %v819 = vunpack.c.h.b16 %v363
        %v820 = vunpack.c.l.b16 %v364
        %v821 = vunpack.c.h.b16 %v364
        %v822 = vunpack.c.l.b16 %v365
        %v823 = vunpack.c.h.b16 %v365
        %v824 = vunpack.c.l.b16 %v366
        %v825 = vunpack.c.h.b16 %v366
        %v826 = vunpack.c.l.b16 %v367
        %v827 = vunpack.c.h.b16 %v367
        %v828 = vunpack.c.l.b16 %v368
        %v829 = vunpack.c.h.b16 %v368
        %v830 = vunpack.c.l.b16 %v369
        %v831 = vunpack.c.h.b16 %v369
        %v832 = vunpack.c.l.b16 %v370
        %v833 = vunpack.c.h.b16 %v370
        %v834 = vunpack.c.l.b16 %v371
        %v835 = vunpack.c.h.b16 %v371
        %v836 = vunpack.c.l.b16 %v372
        %v837 = vunpack.c.h.b16 %v372
        %v838 = vunpack.c.l.b16 %v373
        %v839 = vunpack.c.h.b16 %v373
        %v840 = vunpack.c.l.b16 %v374
        %v841 = vunpack.c.h.b16 %v374
        %v842 = vunpack.c.l.b16 %v375
        %v843 = vunpack.c.h.b16 %v375
        %v844 = vunpack.c.l.b16 %v376
        %v845 = vunpack.c.h.b16 %v376
        %v846 = vunpack.c.l.b16 %v377
        %v847 = vunpack.c.h.b16 %v377
        %v848 = vunpack.c.l.b16 %v378
        %v849 = vunpack.c.h.b16 %v378
        %v850 = vunpack.c.l.b16 %v379
        %v851 = vunpack.c.h.b16 %v379
        %v852 = vunpack.c.l.b16 %v380
        %v853 = vunpack.c.h.b16 %v380
        %v854 = vunpack.c.l.b16 %v381
        %v855 = vunpack.c.h.b16 %v381
        %v856 = vunpack.c.l.b16 %v382
        %v857 = vunpack.c.h.b16 %v382
        %v858 = vunpack.c.l.b16 %v383
        %v859 = vunpack.c.h.b16 %v383
        %v860 = vunpack.c.l.b16 %v384
        %v861 = vunpack.c.h.b16 %v384
        %v862 = vunpack.c.l.b16 %v385
        %v863 = vunpack.c.h.b16 %v385
        %v864 = vunpack.c.l.b16 %v386
        %v865 = vunpack.c.h.b16 %v386
        %v866 = vunpack.c.l.b16 %v387
        %v867 = vunpack.c.h.b16 %v387
        %v868 = vunpack.c.l.b16 %v388
        %v869 = vunpack.c.h.b16 %v388
        %v870 = vunpack.c.l.b16 %v389
        %v871 = vunpack.c.h.b16 %v389
        %v872 = vunpack.c.l.b16 %v390
        %v873 = vunpack.c.h.b16 %v390
        %v874 = vunpack.c.l.b16 %v391
        %v875 = vunpack.c.h.b16 %v391
        %v876 = vunpack.c.l.b16 %v392
        %v877 = vunpack.c.h.b16 %v392
        %v878 = vunpack.c.l.b16 %v393
        %v879 = vunpack.c.h.b16 %v393
        %v880 = vunpack.c.l.b16 %v394
        %v881 = vunpack.c.h.b16 %v394
        %v882 = vunpack.c.l.b16 %v395
        %v883 = vunpack.c.h.b16 %v395
        %v884 = vunpack.c.l.b16 %v396
        %v885 = vunpack.c.h.b16 %v396
        %v886 = vunpack.c.l.b16 %v397
        %v887 = vunpack.c.h.b16 %v397
        %v888 = vunpack.c.l.b16 %v398
        %v889 = vunpack.c.h.b16 %v398
        %v890 = vunpack.c.l.b16 %v399
        %v891 = vunpack.c.h.b16 %v399
        %v892 = vunpack.c.l.b16 %v400
        %v893 = vunpack.c.h.b16 %v400
        %v894 = vunpack.c.l.b16 %v401
        %v895 = vunpack.c.h.b16 %v401
        %v896 = vunpack.c.l.b16 %v402
        %v897 = vunpack.c.h.b16 %v402
        %v898 = vunpack.c.l.b16 %v403
        %v899 = vunpack.c.h.b16 %v403
        %v900 = vunpack.c.l.b16 %v404
        %v901 = vunpack.c.h.b16 %v404
        %v902 = vunpack.c.l.b16 %v405
        %v903 = vunpack.c.h.b16 %v405
        %v904 = vunpack.c.l.b16 %v406
        %v905 = vunpack.c.h.b16 %v406
        %v906 = vunpack.c.l.b16 %v407
        %v907 = vunpack.c.h.b16 %v407
        %v908 = vunpack.c.l.b16 %v408
        %v909 = vunpack.c.h.b16 %v408
        %v910 = vunpack.c.l.b16 %v409
        %v911 = vunpack.c.h.b16 %v409
        %v912 = vunpack.c.l.b16 %v410
        %v913 = vunpack.c.h.b16 %v410
        %v914 = vunpack.c.l.b16 %v411
        %v915 = vunpack.c.h.b16 %v411
        %v916 = vunpack.c.l.b16 %v412
        %v917 = vunpack.c.h.b16 %v412
        %v918 = vunpack.c.l.b16 %v413
        %v919 = vunpack.c.h.b16 %v413
        %v920 = vunpack.c.l.b16 %v414
        %v921 = vunpack.c.h.b16 %v414
        %v922 = vunpack.c.l.b16 %v415
        %v923 = vunpack.c.h.b16 %v415
        %v924 = vunpack.c.l.b16 %v416
        %v925 = vunpack.c.h.b16 %v416
        %v926 = vunpack.c.l.b16 %v417
        %v927 = vunpack.c.h.b16 %v417
        %v928 = vunpack.c.l.b16 %v418
        %v929 = vunpack.c.h.b16 %v418
        %v930 = vunpack.c.l.b16 %v419
        %v931 = vunpack.c.h.b16 %v419
        %v932 = vunpack.c.l.b16 %v420
        %v933 = vunpack.c.h.b16 %v420
        %v934 = vunpack.c.l.b16 %v421
        %v935 = vunpack.c.h.b16 %v421
        %v936 = vunpack.c.l.b16 %v422
        %v937 = vunpack.c.h.b16 %v422
        %v938 = vunpack.c.l.b16 %v423
        %v939 = vunpack.c.h.b16 %v423
        %v940 = vunpack.c.l.b16 %v424
        %v941 = vunpack.c.h.b16 %v424
        %v942 = vunpack.c.l.b16 %v425
        %v943 = vunpack.c.h.b16 %v425
        %v944 = vunpack.c.l.b16 %v426
        %v945 = vunpack.c.h.b16 %v426
        %v946 = vunpack.c.l.b16 %v427
        %v947 = vunpack.c.h.b16 %v427
        %v948 = vunpack.c.l.b16 %v428
        %v949 = vunpack.c.h.b16 %v428
        %v950 = vunpack.c.l.b16 %v429
        %v951 = vunpack.c.h.b16 %v429
        %v952 = vunpack.c.l.b16 %v430
        %v953 = vunpack.c.h.b16 %v430
        %v954 = vunpack.c.l.b16 %v431
        %v955 = vunpack.c.h.b16 %v431
        %v956 = vunpack.c.l.b16 %v432
        %v957 = vunpack.c.h.b16 %v432
        %v958 = vunpack.c.l.b16 %v433
        %v959 = vunpack.c.h.b16 %v433
        %v960 = vunpack.c.l.b16 %v434
        %v961 = vunpack.c.h.b16 %v434
        %v962 = vunpack.c.l.b16 %v435
        %v963 = vunpack.c.h.b16 %v435
        %v964 = vunpack.c.l.b16 %v436
        %v965 = vunpack.c.h.b16 %v436
        %v966 = vunpack.c.l.b16 %v437
        %v967 = vunpack.c.h.b16 %v437
        %v968 = vunpack.c.l.b16 %v438
        %v969 = vunpack.c.h.b16 %v438
        %v970 = vunpack.c.l.b16 %v439
        %v971 = vunpack.c.h.b16 %v439
        %v972 = vunpack.c.l.b16 %v440
        %v973 = vunpack.c.h.b16 %v440
        %v974 = vunpack.c.l.b16 %v441
        %v975 = vunpack.c.h.b16 %v441
        %v976 = vunpack.c.l.b16 %v442
        %v977 = vunpack.c.h.b16 %v442
        %v978 = vunpack.c.l.b16 %v443
        %v979 = vunpack.c.h.b16 %v443
        %v980 = vunpack.c.l.b16 %v444
        %v981 = vunpack.c.h.b16 %v444
        %v982 = vunpack.c.l.b16 %v445
        %v983 = vunpack.c.h.b16 %v445
        %v984 = vunpack.c.l.b16 %v446
        %v985 = vunpack.c.h.b16 %v446
        %v986 = vunpack.c.l.b16 %v447
        %v987 = vunpack.c.h.b16 %v447
        %v988 = vunpack.c.l.b16 %v448
        %v989 = vunpack.c.h.b16 %v448
        %v990 = vunpack.c.l.b16 %v449
        %v991 = vunpack.c.h.b16 %v449
        %v992 = vunpack.c.l.b16 %v450
        %v993 = vunpack.c.h.b16 %v450
        %v994 = vunpack.c.l.b16 %v451
        %v995 = vunpack.c.h.b16 %v451
        %v996 = vunpack.c.l.b16 %v452
        %v997 = vunpack.c.h.b16 %v452
        %v998 = vunpack.c.l.b16 %v453
        %v999 = vunpack.c.h.b16 %v453
        %v1000 = vunpack.c.l.b16 %v454
        %v1001 = vunpack.c.h.b16 %v454
        %v1002 = vunpack.c.l.b16 %v455
        %v1003 = vunpack.c.h.b16 %v455
        %v1004 = vunpack.c.l.b16 %v456
        %v1005 = vunpack.c.h.b16 %v456
        %v1006 = vunpack.c.l.b16 %v457
        %v1007 = vunpack.c.h.b16 %v457
        %v1008 = vunpack.c.l.b16 %v458
        %v1009 = vunpack.c.h.b16 %v458
        %v1010 = vunpack.c.l.b16 %v459
        %v1011 = vunpack.c.h.b16 %v459
        %v1012 = vunpack.c.l.b16 %v460
        %v1013 = vunpack.c.h.b16 %v460
        %v1014 = vunpack.c.l.b16 %v461
        %v1015 = vunpack.c.h.b16 %v461
        %v1016 = vunpack.c.l.b16 %v462
        %v1017 = vunpack.c.h.b16 %v462
        %v1018 = vunpack.c.l.b16 %v463
        %v1019 = vunpack.c.h.b16 %v463
        %v1020 = vunpack.c.l.b16 %v464
        %v1021 = vunpack.c.h.b16 %v464
        %v1022 = vunpack.c.l.b16 %v465
        %v1023 = vunpack.c.h.b16 %v465
        %v1024 = vunpack.c.l.b16 %v466
        %v1025 = vunpack.c.h.b16 %v466
        %v1026 = vunpack.c.l.b16 %v467
        %v1027 = vunpack.c.h.b16 %v467
        %v1028 = vunpack.c.l.b16 %v468
        %v1029 = vunpack.c.h.b16 %v468
        %v1030 = vunpack.c.l.b16 %v469
        %v1031 = vunpack.c.h.b16 %v469
        %v1032 = vunpack.c.l.b16 %v470
        %v1033 = vunpack.c.h.b16 %v470
        %v1034 = vunpack.c.l.b16 %v471
        %v1035 = vunpack.c.h.b16 %v471
        %v1036 = vunpack.c.l.b16 %v472
        %v1037 = vunpack.c.h.b16 %v472
        %v1038 = vunpack.c.l.b16 %v473
        %v1039 = vunpack.c.h.b16 %v473
        %v1040 = vunpack.c.l.b16 %v474
        %v1041 = vunpack.c.h.b16 %v474
        %v1042 = vunpack.c.l.b16 %v475
        %v1043 = vunpack.c.h.b16 %v475
        %v1044 = vunpack.c.l.b16 %v476
        %v1045 = vunpack.c.h.b16 %v476
        %v1046 = vunpack.c.l.b16 %v477
        %v1047 = vunpack.c.h.b16 %v477
        %v1048 = vunpack.c.l.b16 %v478
        %v1049 = vunpack.c.h.b16 %v478
        %v1050 = vunpack.c.l.b16 %v479
        %v1051 = vunpack.c.h.b16 %v479
        %v1052 = vunpack.c.l.b16 %v480
        %v1053 = vunpack.c.h.b16 %v480
        %v1054 = vunpack.c.l.b16 %v481
        %v1055 = vunpack.c.h.b16 %v481
        %v1056 = vunpack.c.l.b16 %v482
        %v1057 = vunpack.c.h.b16 %v482
        %v1058 = vunpack.c.l.b16 %v483
        %v1059 = vunpack.c.h.b16 %v483
        %v1060 = vunpack.c.l.b16 %v484
        %v1061 = vunpack.c.h.b16 %v484
        %v1062 = vunpack.c.l.b16 %v485
        %v1063 = vunpack.c.h.b16 %v485
        %v1064 = vunpack.c.l.b16 %v486
        %v1065 = vunpack.c.h.b16 %v486
        %v1066 = vunpack.c.l.b16 %v487
        %v1067 = vunpack.c.h.b16 %v487
        %v1068 = vunpack.c.l.b16 %v488
        %v1069 = vunpack.c.h.b16 %v488
        %v1070 = vunpack.c.l.b16 %v489
        %v1071 = vunpack.c.h.b16 %v489
        %v1072 = vunpack.c.l.b16 %v490
        %v1073 = vunpack.c.h.b16 %v490
        %v1074 = vunpack.c.l.b16 %v491
        %v1075 = vunpack.c.h.b16 %v491
        %v1076 = vunpack.c.l.b16 %v492
        %v1077 = vunpack.c.h.b16 %v492
        %v1078 = vunpack.c.l.b16 %v493
        %v1079 = vunpack.c.h.b16 %v493
        %v1080 = vunpack.c.l.b16 %v494
        %v1081 = vunpack.c.h.b16 %v494
        %v1082 = vunpack.c.l.b16 %v495
        %v1083 = vunpack.c.h.b16 %v495
        %v1084 = vunpack.c.l.b16 %v496
        %v1085 = vunpack.c.h.b16 %v496
        %v1086 = vunpack.c.l.b16 %v497
        %v1087 = vunpack.c.h.b16 %v497
        %v1088 = vunpack.c.l.b16 %v498
        %v1089 = vunpack.c.h.b16 %v498
        %v1090 = vunpack.c.l.b16 %v499
        %v1091 = vunpack.c.h.b16 %v499
        %v1092 = vunpack.c.l.b16 %v500
        %v1093 = vunpack.c.h.b16 %v500
        %v1094 = vunpack.c.l.b16 %v501
        %v1095 = vunpack.c.h.b16 %v501
        %v1096 = vunpack.c.l.b16 %v502
        %v1097 = vunpack.c.h.b16 %v502
        %v1098 = vunpack.c.l.b16 %v503
        %v1099 = vunpack.c.h.b16 %v503
        %v1100 = vunpack.c.l.b16 %v504
        %v1101 = vunpack.c.h.b16 %v504
        %v1102 = vunpack.c.l.b16 %v505
        %v1103 = vunpack.c.h.b16 %v505
        %v1104 = vunpack.c.l.b16 %v506
        %v1105 = vunpack.c.h.b16 %v506
        %v1106 = vunpack.c.l.b16 %v507
        %v1107 = vunpack.c.h.b16 %v507
        %v1108 = vunpack.c.l.b16 %v508
        %v1109 = vunpack.c.h.b16 %v508
        %v1110 = vunpack.c.l.b16 %v509
        %v1111 = vunpack.c.h.b16 %v509
        %v1112 = vunpack.c.l.b16 %v510
        %v1113 = vunpack.c.h.b16 %v510
        %v1114 = vunpack.c.l.b16 %v511
        %v1115 = vunpack.c.h.b16 %v511
        %v1116 = vunpack.c.l.b16 %v512
        %v1117 = vunpack.c.h.b16 %v512
        %v1118 = vunpack.c.l.b16 %v513
        %v1119 = vunpack.c.h.b16 %v513
        %v1120 = vunpack.c.l.b16 %v514
        %v1121 = vunpack.c.h.b16 %v514
        %v1122 = vunpack.c.l.b16 %v515
        %v1123 = vunpack.c.h.b16 %v515
        %v1124 = vunpack.c.l.b16 %v516
        %v1125 = vunpack.c.h.b16 %v516
        %v1126 = vunpack.c.l.b16 %v517
        %v1127 = vunpack.c.h.b16 %v517
        %v1128 = vpack.c.b16 %v740, %v736
        %v1129 = vpack.c.b16 %v741, %v737
        %v1130 = vpack.c.b16 %v742, %v738
        %v1131 = vpack.c.b16 %v743, %v739
        %v1132 = vpack.c.b16 %v748, %v744
        %v1133 = vpack.c.b16 %v749, %v745
        %v1134 = vpack.c.b16 %v750, %v746
        %v1135 = vpack.c.b16 %v751, %v747
        %v1136 = vpack.c.b16 %v756, %v752
        %v1137 = vpack.c.b16 %v757, %v753
        %v1138 = vpack.c.b16 %v758, %v754
        %v1139 = vpack.c.b16 %v759, %v755
        %v1140 = vpack.c.b16 %v764, %v760
        %v1141 = vpack.c.b16 %v765, %v761
        %v1142 = vpack.c.b16 %v766, %v762
        %v1143 = vpack.c.b16 %v767, %v763
        %v1144 = vpack.c.b16 %v772, %v768
        %v1145 = vpack.c.b16 %v773, %v769
        %v1146 = vpack.c.b16 %v774, %v770
        %v1147 = vpack.c.b16 %v775, %v771
        %v1148 = vpack.c.b16 %v780, %v776
        %v1149 = vpack.c.b16 %v781, %v777
        %v1150 = vpack.c.b16 %v782, %v778
        %v1151 = vpack.c.b16 %v783, %v779
        %v1152 = vpack.c.b16 %v788, %v784
        %v1153 = vpack.c.b16 %v789, %v785
        %v1154 = vpack.c.b16 %v790, %v786
        %v1155 = vpack.c.b16 %v791, %v787
        %v1156 = vpack.c.b16 %v796, %v792
        %v1157 = vpack.c.b16 %v797, %v793
        %v1158 = vpack.c.b16 %v798, %v794
        %v1159 = vpack.c.b16 %v799, %v795
        %v1160 = vpack.c.b16 %v804, %v800
        %v1161 = vpack.c.b16 %v805, %v801
        %v1162 = vpack.c.b16 %v806, %v802
        %v1163 = vpack.c.b16 %v807, %v803
        %v1164 = vpack.c.b16 %v812, %v808
        %v1165 = vpack.c.b16 %v813, %v809
        %v1166 = vpack.c.b16 %v814, %v810
        %v1167 = vpack.c.b16 %v815, %v811
        %v1168 = vpack.c.b16 %v820, %v816
        %v1169 = vpack.c.b16 %v821, %v817
        %v1170 = vpack.c.b16 %v822, %v818
        %v1171 = vpack.c.b16 %v823, %v819
        %v1172 = vpack.c.b16 %v828, %v824
        %v1173 = vpack.c.b16 %v829, %v825
        %v1174 = vpack.c.b16 %v830, %v826
        %v1175 = vpack.c.b16 %v831, %v827
        %v1176 = vpack.c.b16 %v836, %v832
        %v1177 = vpack.c.b16 %v837, %v833
        %v1178 = vpack.c.b16 %v838, %v834
        %v1179 = vpack.c.b16 %v839, %v835
        %v1180 = vpack.c.b16 %v844, %v840
        %v1181 = vpack.c.b16 %v845, %v841
        %v1182 = vpack.c.b16 %v846, %v842
        %v1183 = vpack.c.b16 %v847, %v843
        %v1184 = vpack.c.b16 %v852, %v848
        %v1185 = vpack.c.b16 %v853, %v849
        %v1186 = vpack.c.b16 %v854, %v850
        %v1187 = vpack.c.b16 %v855, %v851
        %v1188 = vpack.c.b16 %v860, %v856
        %v1189 = vpack.c.b16 %v861, %v857
        %v1190 = vpack.c.b16 %v862, %v858
        %v1191 = vpack.c.b16 %v863, %v859
        %v1192 = vpack.c.b16 %v868, %v864
        %v1193 = vpack.c.b16 %v869, %v865
        %v1194 = vpack.c.b16 %v870, %v866
        %v1195 = vpack.c.b16 %v871, %v867
        %v1196 = vpack.c.b16 %v876, %v872
        %v1197 = vpack.c.b16 %v877, %v873
        %v1198 = vpack.c.b16 %v878, %v874
        %v1199 = vpack.c.b16 %v879, %v875
        %v1200 = vpack.c.b16 %v884, %v880
        %v1201 = vpack.c.b16 %v885, %v881
        %v1202 = vpack.c.b16 %v886, %v882
        %v1203 = vpack.c.b16 %v887, %v883
        %v1204 = vpack.c.b16 %v892, %v888
        %v1205 = vpack.c.b16 %v893, %v889
        %v1206 = vpack.c.b16 %v894, %v890
        %v1207 = vpack.c.b16 %v895, %v891
        %v1208 = vpack.c.b16 %v900, %v896
        %v1209 = vpack.c.b16 %v901, %v897
        %v1210 = vpack.c.b16 %v902, %v898
        %v1211 = vpack.c.b16 %v903, %v899
        %v1212 = vpack.c.b16 %v908, %v904
        %v1213 = vpack.c.b16 %v909, %v905
        %v1214 = vpack.c.b16 %v910, %v906
        %v1215 = vpack.c.b16 %v911, %v907
        %v1216 = vpack.c.b16 %v916, %v912
        %v1217 = vpack.c.b16 %v917, %v913
        %v1218 = vpack.c.b16 %v918, %v914
        %v1219 = vpack.c.b16 %v919, %v915
        %v1220 = vpack.c.b16 %v924, %v920
        %v1221 = vpack.c.b16 %v925, %v921
        %v1222 = vpack.c.b16 %v926, %v922
        %v1223 = vpack.c.b16 %v927, %v923
        %v1224 = vpack.c.b16 %v932, %v928
        %v1225 = vpack.c.b16 %v933, %v929
        %v1226 = vpack.c.b16 %v934, %v930
        %v1227 = vpack.c.b16 %v935, %v931
        %v1228 = vpack.c.b16 %v940, %v936
        %v1229 = vpack.c.b16 %v941, %v937
        %v1230 = vpack.c.b16 %v942, %v938
        %v1231 = vpack.c.b16 %v943, %v939
        %v1232 = vpack.c.b16 %v948, %v944
        %v1233 = vpack.c.b16 %v949, %v945
        %v1234 = vpack.c.b16 %v950, %v946
        %v1235 = vpack.c.b16 %v951, %v947
        %v1236 = vpack.c.b16 %v956, %v952
        %v1237 = vpack.c.b16 %v957, %v953
        %v1238 = vpack.c.b16 %v958, %v954
        %v1239 = vpack.c.b16 %v959, %v955
        %v1240 = vpack.c.b16 %v964, %v960
        %v1241 = vpack.c.b16 %v965, %v961
        %v1242 = vpack.c.b16 %v966, %v962
        %v1243 = vpack.c.b16 %v967, %v963
        %v1244 = vpack.c.b16 %v972, %v968
        %v1245 = vpack.c.b16 %v973, %v969
        %v1246 = vpack.c.b16 %v974, %v970
        %v1247 = vpack.c.b16 %v975, %v971
        %v1248 = vpack.c.b16 %v980, %v976
        %v1249 = vpack.c.b16 %v981, %v977
        %v1250 = vpack.c.b16 %v982, %v978
        %v1251 = vpack.c.b16 %v983, %v979
        %v1252 = vpack.c.b16 %v988, %v984
        %v1253 = vpack.c.b16 %v989, %v985
        %v1254 = vpack.c.b16 %v990, %v986
        %v1255 = vpack.c.b16 %v991, %v987
        %v1256 = vpack.c.b16 %v996, %v992
        %v1257 = vpack.c.b16 %v997, %v993
        %v1258 = vpack.c.b16 %v998, %v994
        %v1259 = vpack.c.b16 %v999, %v995
        %v1260 = vpack.c.b16 %v1004, %v1000
        %v1261 = vpack.c.b16 %v1005, %v1001
        %v1262 = vpack.c.b16 %v1006, %v1002
        %v1263 = vpack.c.b16 %v1007, %v1003
        %v1264 = vpack.c.b16 %v1012, %v1008
        %v1265 = vpack.c.b16 %v1013, %v1009
        %v1266 = vpack.c.b16 %v1014, %v1010
        %v1267 = vpack.c.b16 %v1015, %v1011
        %v1268 = vpack.c.b16 %v1020, %v1016
        %v1269 = vpack.c.b16 %v1021, %v1017
        %v1270 = vpack.c.b16 %v1022, %v1018
        %v1271 = vpack.c.b16 %v1023, %v1019
        %v1272 = vpack.c.b16 %v1028, %v1024
        %v1273 = vpack.c.b16 %v1029, %v1025
        %v1274 = vpack.c.b16 %v1030, %v1026
        %v1275 = vpack.c.b16 %v1031, %v1027
        %v1276 = vpack.c.b16 %v1036, %v1032
        %v1277 = vpack.c.b16 %v1037, %v1033
        %v1278 = vpack.c.b16 %v1038, %v1034
        %v1279 = vpack.c.b16 %v1039, %v1035
        %v1280 = vpack.c.b16 %v1044, %v1040
        %v1281 = vpack.c.b16 %v1045, %v1041
        %v1282 = vpack.c.b16 %v1046, %v1042
        %v1283 = vpack.c.b16 %v1047, %v1043
        %v1284 = vpack.c.b16 %v1052, %v1048
        %v1285 = vpack.c.b16 %v1053, %v1049
        %v1286 = vpack.c.b16 %v1054, %v1050
        %v1287 = vpack.c.b16 %v1055, %v1051
        %v1288 = vpack.c.b16 %v1060, %v1056
        %v1289 = vpack.c.b16 %v1061, %v1057
        %v1290 = vpack.c.b16 %v1062, %v1058
        %v1291 = vpack.c.b16 %v1063, %v1059
        %v1292 = vpack.c.b16 %v1068, %v1064
        %v1293 = vpack.c.b16 %v1069, %v1065
        %v1294 = vpack.c.b16 %v1070, %v1066
        %v1295 = vpack.c.b16 %v1071, %v1067
        %v1296 = vpack.c.b16 %v1076, %v1072
        %v1297 = vpack.c.b16 %v1077, %v1073
        %v1298 = vpack.c.b16 %v1078, %v1074
        %v1299 = vpack.c.b16 %v1079, %v1075
        %v1300 = vpack.c.b16 %v1084, %v1080
        %v1301 = vpack.c.b16 %v1085, %v1081
        %v1302 = vpack.c.b16 %v1086, %v1082
        %v1303 = vpack.c.b16 %v1087, %v1083
        %v1304 = vpack.c.b16 %v1092, %v1088
        %v1305 = vpack.c.b16 %v1093, %v1089
        %v1306 = vpack.c.b16 %v1094, %v1090
        %v1307 = vpack.c.b16 %v1095, %v1091
        %v1308 = vpack.c.b16 %v1100, %v1096
        %v1309 = vpack.c.b16 %v1101, %v1097
        %v1310 = vpack.c.b16 %v1102, %v1098
        %v1311 = vpack.c.b16 %v1103, %v1099
        %v1312 = vpack.c.b16 %v1108, %v1104
        %v1313 = vpack.c.b16 %v1109, %v1105
        %v1314 = vpack.c.b16 %v1110, %v1106
        %v1315 = vpack.c.b16 %v1111, %v1107
        %v1316 = vpack.c.b16 %v1116, %v1112
        %v1317 = vpack.c.b16 %v1117, %v1113
        %v1318 = vpack.c.b16 %v1118, %v1114
        %v1319 = vpack.c.b16 %v1119, %v1115
        %v1320 = vpack.c.b16 %v1124, %v1120
        %v1321 = vpack.c.b16 %v1125, %v1121
        %v1322 = vpack.c.b16 %v1126, %v1122
        %v1323 = vpack.c.b16 %v1127, %v1123
        %vm1520 = vcmask 130048
        %v1522 = vsel %vm1520, %v321, 0
        %1524 = vmatprep.subr.bf16.mxu0 %v1157
        %1525 = vmatpush1.bf16.msra.mxu0 %v1156
        %1526 = vmatprep.subr.bf16.mxu0 %v1153
        %1527 = vmatpush1.bf16.msra.mxu0 %v1152
        %1528 = vmatprep.subr.bf16.mxu0 %v1149
        %1529 = vmatpush1.bf16.msra.mxu0 %v1148
        %1530 = vmatprep.subr.bf16.mxu0 %v1145
        %1531 = vmatpush1.bf16.msra.mxu0 %v1144
        %1532 = vmatprep.subr.bf16.mxu0 %v1141
        %1533 = vmatpush1.bf16.msra.mxu0 %v1140
        %1534 = vmatprep.subr.bf16.mxu0 %v1137
        %1535 = vmatpush1.bf16.msra.mxu0 %v1136
        %1536 = vmatprep.subr.bf16.mxu0 %v1133
        %1537 = vmatpush1.bf16.msra.mxu0 %v1132
        %1538 = vmatprep.subr.bf16.mxu0 %v1129
        %1539 = vmatpush1.bf16.msra.mxu0 %v1128
        %1540 = vmatprep.subr.bf16.mxu0 %v1189
        %1541 = vmatpush2.bf16.msra.mxu0 %v1188
        %1542 = vmatprep.subr.bf16.mxu0 %v1185
        %1543 = vmatpush2.bf16.msra.mxu0 %v1184
        %1544 = vmatprep.subr.bf16.mxu0 %v1181
        %1545 = vmatpush2.bf16.msra.mxu0 %v1180
        %1546 = vmatprep.subr.bf16.mxu0 %v1177
        %1547 = vmatpush2.bf16.msra.mxu0 %v1176
        %1548 = vmatprep.subr.bf16.mxu0 %v1173
        %1549 = vmatpush2.bf16.msra.mxu0 %v1172
        %1550 = vmatprep.subr.bf16.mxu0 %v1169
        %1551 = vmatpush2.bf16.msra.mxu0 %v1168
        %1552 = vmatprep.subr.bf16.mxu0 %v1165
        %1553 = vmatpush2.bf16.msra.mxu0 %v1164
        %1554 = vmatprep.subr.bf16.mxu0 %v1161
        %1555 = vmatpush2.bf16.msra.mxu0 %v1160
        %1556 = vmatprep.mubr.bf16.mxu0 %v316
        %1557 = vmatmul.mubr.bf16.gmra.mxu0 %v315
        %v1558 = vpop.f32.mrf.mxu0
        %v1559 = vadd.f32 %v523, %v1558
        %v1560 = vpop.f32.mrf.mxu0
        %v1561 = vadd.f32 %v527, %v1560
        %v1562 = vpop.f32.mrf.mxu0
        %v1563 = vpop.f32.mrf.mxu0
        %1564 = vdwg.mxu0
        %1565 = vmatprep.subr.bf16.mxu0 %v1221
        %1566 = vmatpush1.bf16.msra.mxu0 %v1220
        %1567 = vmatprep.subr.bf16.mxu0 %v1217
        %1568 = vmatpush1.bf16.msra.mxu0 %v1216
        %1569 = vmatprep.subr.bf16.mxu0 %v1213
        %1570 = vmatpush1.bf16.msra.mxu0 %v1212
        %1571 = vmatprep.subr.bf16.mxu0 %v1209
        %1572 = vmatpush1.bf16.msra.mxu0 %v1208
        %1573 = vmatprep.subr.bf16.mxu0 %v1205
        %1574 = vmatpush1.bf16.msra.mxu0 %v1204
        %1575 = vmatprep.subr.bf16.mxu0 %v1201
        %1576 = vmatpush1.bf16.msra.mxu0 %v1200
        %1577 = vmatprep.subr.bf16.mxu0 %v1197
        %1578 = vmatpush1.bf16.msra.mxu0 %v1196
        %1579 = vmatprep.subr.bf16.mxu0 %v1193
        %1580 = vmatpush1.bf16.msra.mxu0 %v1192
        %1581 = vmatprep.subr.bf16.mxu0 %v1253
        %1582 = vmatpush2.bf16.msra.mxu0 %v1252
        %1583 = vmatprep.subr.bf16.mxu0 %v1249
        %1584 = vmatpush2.bf16.msra.mxu0 %v1248
        %1585 = vmatprep.subr.bf16.mxu0 %v1245
        %1586 = vmatpush2.bf16.msra.mxu0 %v1244
        %1587 = vmatprep.subr.bf16.mxu0 %v1241
        %1588 = vmatpush2.bf16.msra.mxu0 %v1240
        %1589 = vmatprep.subr.bf16.mxu0 %v1237
        %1590 = vmatpush2.bf16.msra.mxu0 %v1236
        %1591 = vmatprep.subr.bf16.mxu0 %v1233
        %1592 = vmatpush2.bf16.msra.mxu0 %v1232
        %1593 = vmatprep.subr.bf16.mxu0 %v1229
        %1594 = vmatpush2.bf16.msra.mxu0 %v1228
        %1595 = vmatprep.subr.bf16.mxu0 %v1225
        %1596 = vmatpush2.bf16.msra.mxu0 %v1224
        %1597 = vmatprep.mubr.bf16.mxu0 %v318
        %1598 = vmatmul.mubr.bf16.gmra.mxu0 %v317
        %v1599 = vpop.f32.mrf.mxu0
        %v1600 = vadd.f32 %v1559, %v1599
        %v1601 = vpop.f32.mrf.mxu0
        %v1602 = vadd.f32 %v1561, %v1601
        %v1603 = vpop.f32.mrf.mxu0
        %v1604 = vpop.f32.mrf.mxu0
        %1605 = vdwg.mxu0
        %1606 = vmatprep.subr.bf16.mxu0 %v1285
        %1607 = vmatpush1.bf16.msra.mxu0 %v1284
        %1608 = vmatprep.subr.bf16.mxu0 %v1281
        %1609 = vmatpush1.bf16.msra.mxu0 %v1280
        %1610 = vmatprep.subr.bf16.mxu0 %v1277
        %1611 = vmatpush1.bf16.msra.mxu0 %v1276
        %1612 = vmatprep.subr.bf16.mxu0 %v1273
        %1613 = vmatpush1.bf16.msra.mxu0 %v1272
        %1614 = vmatprep.subr.bf16.mxu0 %v1269
        %1615 = vmatpush1.bf16.msra.mxu0 %v1268
        %1616 = vmatprep.subr.bf16.mxu0 %v1265
        %1617 = vmatpush1.bf16.msra.mxu0 %v1264
        %1618 = vmatprep.subr.bf16.mxu0 %v1261
        %1619 = vmatpush1.bf16.msra.mxu0 %v1260
        %1620 = vmatprep.subr.bf16.mxu0 %v1257
        %1621 = vmatpush1.bf16.msra.mxu0 %v1256
        %1622 = vmatprep.subr.bf16.mxu0 %v1317
        %1623 = vmatpush2.bf16.msra.mxu0 %v1316
        %1624 = vmatprep.subr.bf16.mxu0 %v1313
        %1625 = vmatpush2.bf16.msra.mxu0 %v1312
        %1626 = vmatprep.subr.bf16.mxu0 %v1309
        %1627 = vmatpush2.bf16.msra.mxu0 %v1308
        %1628 = vmatprep.subr.bf16.mxu0 %v1305
        %1629 = vmatpush2.bf16.msra.mxu0 %v1304
        %1630 = vmatprep.subr.bf16.mxu0 %v1301
        %1631 = vmatpush2.bf16.msra.mxu0 %v1300
        %1632 = vmatprep.subr.bf16.mxu0 %v1297
        %1633 = vmatpush2.bf16.msra.mxu0 %v1296
        %1634 = vmatprep.subr.bf16.mxu0 %v1293
        %1635 = vmatpush2.bf16.msra.mxu0 %v1292
        %1636 = vmatprep.subr.bf16.mxu0 %v1289
        %1637 = vmatpush2.bf16.msra.mxu0 %v1288
        %1638 = vmatprep.mubr.bf16.mxu0 %v320
        %1639 = vmatmul.mubr.bf16.gmra.mxu0 %v319
        %v1640 = vpop.f32.mrf.mxu0
        %v1641 = vadd.f32 %v1600, %v1640
        %v1642 = vpop.f32.mrf.mxu0
        %v1643 = vadd.f32 %v1602, %v1642
        %v1644 = vpop.f32.mrf.mxu0
        %v1645 = vpop.f32.mrf.mxu0
        %1646 = vdwg.mxu0
        %1647 = vmatprep.subr.bf16.mxu0 0
        %1648 = vmatpush1.bf16.msra.mxu0 0
        %1649 = vmatprep.subr.bf16.mxu0 0
        %1650 = vmatpush1.bf16.msra.mxu0 0
        %1651 = vmatprep.subr.bf16.mxu0 0
        %1652 = vmatpush1.bf16.msra.mxu0 0
        %1653 = vmatprep.subr.bf16.mxu0 0
        %1654 = vmatpush1.bf16.msra.mxu0 0
        %1655 = vmatprep.subr.bf16.mxu0 0
        %1656 = vmatpush1.bf16.msra.mxu0 0
        %1657 = vmatprep.subr.bf16.mxu0 0
        %1658 = vmatpush1.bf16.msra.mxu0 0
        %1659 = vmatprep.subr.bf16.mxu0 0
        %1660 = vmatpush1.bf16.msra.mxu0 0
        %1661 = vmatprep.subr.bf16.mxu0 %v1321
        %1662 = vmatpush1.bf16.msra.mxu0 %v1320
        %1663 = vmatprep.subr.bf16.mxu0 0
        %1664 = vmatpush2.bf16.msra.mxu0 0
        %1665 = vmatprep.subr.bf16.mxu0 0
        %1666 = vmatpush2.bf16.msra.mxu0 0
        %1667 = vmatprep.subr.bf16.mxu0 0
        %1668 = vmatpush2.bf16.msra.mxu0 0
        %1669 = vmatprep.subr.bf16.mxu0 0
        %1670 = vmatpush2.bf16.msra.mxu0 0
        %1671 = vmatprep.subr.bf16.mxu0 0
        %1672 = vmatpush2.bf16.msra.mxu0 0
        %1673 = vmatprep.subr.bf16.mxu0 0
        %1674 = vmatpush2.bf16.msra.mxu0 0
        %1675 = vmatprep.subr.bf16.mxu0 0
        %1676 = vmatpush2.bf16.msra.mxu0 0
        %1677 = vmatprep.subr.bf16.mxu0 0
        %1678 = vmatpush2.bf16.msra.mxu0 0
        %1679 = vmatprep.mubr.bf16.mxu0 0
        %1680 = vmatmul.mubr.bf16.gmra.mxu0 %v1522
        %v1681 = vpop.f32.mrf.mxu0
        %v1682 = vadd.f32 %v1641, %v1681
        %v1683 = vpop.f32.mrf.mxu0
        %v1684 = vadd.f32 %v1643, %v1683
        %v1685 = vpop.f32.mrf.mxu0
        %v1686 = vpop.f32.mrf.mxu0
        %1687 = vdwg.mxu0
        %1688 = vmatprep.subr.bf16.mxu0 %v1159
        %1689 = vmatpush1.bf16.msra.mxu0 %v1158
        %1690 = vmatprep.subr.bf16.mxu0 %v1155
        %1691 = vmatpush1.bf16.msra.mxu0 %v1154
        %1692 = vmatprep.subr.bf16.mxu0 %v1151
        %1693 = vmatpush1.bf16.msra.mxu0 %v1150
        %1694 = vmatprep.subr.bf16.mxu0 %v1147
        %1695 = vmatpush1.bf16.msra.mxu0 %v1146
        %1696 = vmatprep.subr.bf16.mxu0 %v1143
        %1697 = vmatpush1.bf16.msra.mxu0 %v1142
        %1698 = vmatprep.subr.bf16.mxu0 %v1139
        %1699 = vmatpush1.bf16.msra.mxu0 %v1138
        %1700 = vmatprep.subr.bf16.mxu0 %v1135
        %1701 = vmatpush1.bf16.msra.mxu0 %v1134
        %1702 = vmatprep.subr.bf16.mxu0 %v1131
        %1703 = vmatpush1.bf16.msra.mxu0 %v1130
        %1704 = vmatprep.subr.bf16.mxu0 %v1191
        %1705 = vmatpush2.bf16.msra.mxu0 %v1190
        %1706 = vmatprep.subr.bf16.mxu0 %v1187
        %1707 = vmatpush2.bf16.msra.mxu0 %v1186
        %1708 = vmatprep.subr.bf16.mxu0 %v1183
        %1709 = vmatpush2.bf16.msra.mxu0 %v1182
        %1710 = vmatprep.subr.bf16.mxu0 %v1179
        %1711 = vmatpush2.bf16.msra.mxu0 %v1178
        %1712 = vmatprep.subr.bf16.mxu0 %v1175
        %1713 = vmatpush2.bf16.msra.mxu0 %v1174
        %1714 = vmatprep.subr.bf16.mxu0 %v1171
        %1715 = vmatpush2.bf16.msra.mxu0 %v1170
        %1716 = vmatprep.subr.bf16.mxu0 %v1167
        %1717 = vmatpush2.bf16.msra.mxu0 %v1166
        %1718 = vmatprep.subr.bf16.mxu0 %v1163
        %1719 = vmatpush2.bf16.msra.mxu0 %v1162
        %1720 = vmatprep.mubr.bf16.mxu0 %v316
        %1721 = vmatmul.mubr.bf16.gmra.mxu0 %v315
        %v1722 = vpop.f32.mrf.mxu0
        %v1723 = vadd.f32 %v531, %v1722
        %v1724 = vpop.f32.mrf.mxu0
        %v1725 = vadd.f32 %v535, %v1724
        %v1726 = vpop.f32.mrf.mxu0
        %v1727 = vpop.f32.mrf.mxu0
        %1728 = vdwg.mxu0
        %1729 = vmatprep.subr.bf16.mxu0 %v1223
        %1730 = vmatpush1.bf16.msra.mxu0 %v1222
        %1731 = vmatprep.subr.bf16.mxu0 %v1219
        %1732 = vmatpush1.bf16.msra.mxu0 %v1218
        %1733 = vmatprep.subr.bf16.mxu0 %v1215
        %1734 = vmatpush1.bf16.msra.mxu0 %v1214
        %1735 = vmatprep.subr.bf16.mxu0 %v1211
        %1736 = vmatpush1.bf16.msra.mxu0 %v1210
        %1737 = vmatprep.subr.bf16.mxu0 %v1207
        %1738 = vmatpush1.bf16.msra.mxu0 %v1206
        %1739 = vmatprep.subr.bf16.mxu0 %v1203
        %1740 = vmatpush1.bf16.msra.mxu0 %v1202
        %1741 = vmatprep.subr.bf16.mxu0 %v1199
        %1742 = vmatpush1.bf16.msra.mxu0 %v1198
        %1743 = vmatprep.subr.bf16.mxu0 %v1195
        %1744 = vmatpush1.bf16.msra.mxu0 %v1194
        %1745 = vmatprep.subr.bf16.mxu0 %v1255
        %1746 = vmatpush2.bf16.msra.mxu0 %v1254
        %1747 = vmatprep.subr.bf16.mxu0 %v1251
        %1748 = vmatpush2.bf16.msra.mxu0 %v1250
        %1749 = vmatprep.subr.bf16.mxu0 %v1247
        %1750 = vmatpush2.bf16.msra.mxu0 %v1246
        %1751 = vmatprep.subr.bf16.mxu0 %v1243
        %1752 = vmatpush2.bf16.msra.mxu0 %v1242
        %1753 = vmatprep.subr.bf16.mxu0 %v1239
        %1754 = vmatpush2.bf16.msra.mxu0 %v1238
        %1755 = vmatprep.subr.bf16.mxu0 %v1235
        %1756 = vmatpush2.bf16.msra.mxu0 %v1234
        %1757 = vmatprep.subr.bf16.mxu0 %v1231
        %1758 = vmatpush2.bf16.msra.mxu0 %v1230
        %1759 = vmatprep.subr.bf16.mxu0 %v1227
        %1760 = vmatpush2.bf16.msra.mxu0 %v1226
        %1761 = vmatprep.mubr.bf16.mxu0 %v318
        %1762 = vmatmul.mubr.bf16.gmra.mxu0 %v317
        %v1763 = vpop.f32.mrf.mxu0
        %v1764 = vadd.f32 %v1723, %v1763
        %v1765 = vpop.f32.mrf.mxu0
        %v1766 = vadd.f32 %v1725, %v1765
        %v1767 = vpop.f32.mrf.mxu0
        %v1768 = vpop.f32.mrf.mxu0
        %1769 = vdwg.mxu0
        %1770 = vmatprep.subr.bf16.mxu0 %v1287
        %1771 = vmatpush1.bf16.msra.mxu0 %v1286
        %1772 = vmatprep.subr.bf16.mxu0 %v1283
        %1773 = vmatpush1.bf16.msra.mxu0 %v1282
        %1774 = vmatprep.subr.bf16.mxu0 %v1279
        %1775 = vmatpush1.bf16.msra.mxu0 %v1278
        %1776 = vmatprep.subr.bf16.mxu0 %v1275
        %1777 = vmatpush1.bf16.msra.mxu0 %v1274
        %1778 = vmatprep.subr.bf16.mxu0 %v1271
        %1779 = vmatpush1.bf16.msra.mxu0 %v1270
        %1780 = vmatprep.subr.bf16.mxu0 %v1267
        %1781 = vmatpush1.bf16.msra.mxu0 %v1266
        %1782 = vmatprep.subr.bf16.mxu0 %v1263
        %1783 = vmatpush1.bf16.msra.mxu0 %v1262
        %1784 = vmatprep.subr.bf16.mxu0 %v1259
        %1785 = vmatpush1.bf16.msra.mxu0 %v1258
        %1786 = vmatprep.subr.bf16.mxu0 %v1319
        %1787 = vmatpush2.bf16.msra.mxu0 %v1318
        %1788 = vmatprep.subr.bf16.mxu0 %v1315
        %1789 = vmatpush2.bf16.msra.mxu0 %v1314
        %1790 = vmatprep.subr.bf16.mxu0 %v1311
        %1791 = vmatpush2.bf16.msra.mxu0 %v1310
        %1792 = vmatprep.subr.bf16.mxu0 %v1307
        %1793 = vmatpush2.bf16.msra.mxu0 %v1306
        %1794 = vmatprep.subr.bf16.mxu0 %v1303
        %1795 = vmatpush2.bf16.msra.mxu0 %v1302
        %1796 = vmatprep.subr.bf16.mxu0 %v1299
        %1797 = vmatpush2.bf16.msra.mxu0 %v1298
        %1798 = vmatprep.subr.bf16.mxu0 %v1295
        %1799 = vmatpush2.bf16.msra.mxu0 %v1294
        %1800 = vmatprep.subr.bf16.mxu0 %v1291
        %1801 = vmatpush2.bf16.msra.mxu0 %v1290
        %1802 = vmatprep.mubr.bf16.mxu0 %v320
        %1803 = vmatmul.mubr.bf16.gmra.mxu0 %v319
        %v1804 = vpop.f32.mrf.mxu0
        %v1805 = vadd.f32 %v1764, %v1804
        %v1806 = vpop.f32.mrf.mxu0
        %v1807 = vadd.f32 %v1766, %v1806
        %v1808 = vpop.f32.mrf.mxu0
        %v1809 = vpop.f32.mrf.mxu0
        %1810 = vdwg.mxu0
        %1811 = vmatprep.subr.bf16.mxu0 0
        %1812 = vmatpush1.bf16.msra.mxu0 0
        %1813 = vmatprep.subr.bf16.mxu0 0
        %1814 = vmatpush1.bf16.msra.mxu0 0
        %1815 = vmatprep.subr.bf16.mxu0 0
        %1816 = vmatpush1.bf16.msra.mxu0 0
        %1817 = vmatprep.subr.bf16.mxu0 0
        %1818 = vmatpush1.bf16.msra.mxu0 0
        %1819 = vmatprep.subr.bf16.mxu0 0
        %1820 = vmatpush1.bf16.msra.mxu0 0
        %1821 = vmatprep.subr.bf16.mxu0 0
        %1822 = vmatpush1.bf16.msra.mxu0 0
        %1823 = vmatprep.subr.bf16.mxu0 0
        %1824 = vmatpush1.bf16.msra.mxu0 0
        %1825 = vmatprep.subr.bf16.mxu0 %v1323
        %1826 = vmatpush1.bf16.msra.mxu0 %v1322
        %1827 = vmatprep.subr.bf16.mxu0 0
        %1828 = vmatpush2.bf16.msra.mxu0 0
        %1829 = vmatprep.subr.bf16.mxu0 0
        %1830 = vmatpush2.bf16.msra.mxu0 0
        %1831 = vmatprep.subr.bf16.mxu0 0
        %1832 = vmatpush2.bf16.msra.mxu0 0
        %1833 = vmatprep.subr.bf16.mxu0 0
        %1834 = vmatpush2.bf16.msra.mxu0 0
        %1835 = vmatprep.subr.bf16.mxu0 0
        %1836 = vmatpush2.bf16.msra.mxu0 0
        %1837 = vmatprep.subr.bf16.mxu0 0
        %1838 = vmatpush2.bf16.msra.mxu0 0
        %1839 = vmatprep.subr.bf16.mxu0 0
        %1840 = vmatpush2.bf16.msra.mxu0 0
        %1841 = vmatprep.subr.bf16.mxu0 0
        %1842 = vmatpush2.bf16.msra.mxu0 0
        %1843 = vmatprep.mubr.bf16.mxu0 0
        %1844 = vmatmul.mubr.bf16.gmra.mxu0 %v1522
        %v1845 = vpop.f32.mrf.mxu0
        %v1846 = vadd.f32 %v1805, %v1845
        %v1847 = vpop.f32.mrf.mxu0
        %v1848 = vadd.f32 %v1807, %v1847
        %v1849 = vpop.f32.mrf.mxu0
        %v1850 = vpop.f32.mrf.mxu0
        %1851 = vdwg.mxu0
        %v1852 = vmax.f32 %v1682, 0.0
        %v1853 = vmax.f32 %v1684, 0.0
        %v1854 = vmax.f32 %v1846, 0.0
        %v1855 = vmax.f32 %v1848, 0.0
        %v1856 = vpack.c.bf16 %v1852, %v1852
        %v1857 = vpack.c.bf16 %v1853, %v1853
        %v1858 = vpack.c.bf16 %v1854, %v1854
        %v1859 = vpack.c.bf16 %v1855, %v1855
        %v1860 = vld [vmem:[#allocation2] sm:$0xff]
        %v1861 = vld [vmem:[#allocation2 + $0x8] sm:$0xff]
        %v1862 = vld [vmem:[#allocation2 + $0x10] sm:$0xff]
        %v1863 = vld [vmem:[#allocation2 + $0x18] sm:$0xff]
        %v1864 = vld [vmem:[#allocation2 + $0x20] sm:$0xff]
        %v1865 = vld [vmem:[#allocation2 + $0x28] sm:$0xff]
        %v1866 = vld [vmem:[#allocation2 + $0x30] sm:$0xff]
        %v1867 = vld [vmem:[#allocation2 + $0x38] sm:$0xff]
        %v1868 = vld [vmem:[#allocation2 + $0x40] sm:$0xff]
        %v1869 = vld [vmem:[#allocation2 + $0x48] sm:$0xff]
        %v1870 = vld [vmem:[#allocation2 + $0x50] sm:$0xff]
        %v1871 = vld [vmem:[#allocation2 + $0x58] sm:$0xff]
        %v1872 = vld [vmem:[#allocation2 + $0x60] sm:$0xff]
        %v1873 = vld [vmem:[#allocation2 + $0x68] sm:$0xff]
        %v1874 = vld [vmem:[#allocation2 + $0x70] sm:$0xff]
        %v1875 = vld [vmem:[#allocation2 + $0x78] sm:$0xff]
        %v1876 = vld [vmem:[#allocation2 + $0x80] sm:$0xff]
        %v1877 = vld [vmem:[#allocation2 + $0x88] sm:$0xff]
        %v1878 = vld [vmem:[#allocation2 + $0x90] sm:$0xff]
        %v1879 = vld [vmem:[#allocation2 + $0x98] sm:$0xff]
        %v1880 = vld [vmem:[#allocation2 + $0xa0] sm:$0xff]
        %v1881 = vld [vmem:[#allocation2 + $0xa8] sm:$0xff]
        %v1882 = vld [vmem:[#allocation2 + $0xb0] sm:$0xff]
        %v1883 = vld [vmem:[#allocation2 + $0xb8] sm:$0xff]
        %v1884 = vld [vmem:[#allocation2 + $0xc0] sm:$0xff]
        %v1885 = vld [vmem:[#allocation2 + $0xc8] sm:$0xff]
        %v1886 = vld [vmem:[#allocation2 + $0xd0] sm:$0xff]
        %v1887 = vld [vmem:[#allocation2 + $0xd8] sm:$0xff]
        %v1888 = vld [vmem:[#allocation2 + $0xe0] sm:$0xff]
        %v1889 = vld [vmem:[#allocation2 + $0xe8] sm:$0xff]
        %v1890 = vld [vmem:[#allocation2 + $0xf0] sm:$0xff]
        %v1891 = vld [vmem:[#allocation2 + $0xf8] sm:$0xff]
        %v1892 = vld [vmem:[#allocation2 + $0x100] sm:$0xff]
        %v1893 = vld [vmem:[#allocation2 + $0x108] sm:$0xff]
        %v1894 = vld [vmem:[#allocation2 + $0x110] sm:$0xff]
        %v1895 = vld [vmem:[#allocation2 + $0x118] sm:$0xff]
        %v1896 = vld [vmem:[#allocation2 + $0x120] sm:$0xff]
        %v1897 = vld [vmem:[#allocation2 + $0x128] sm:$0xff]
        %v1898 = vld [vmem:[#allocation2 + $0x130] sm:$0xff]
        %v1899 = vld [vmem:[#allocation2 + $0x138] sm:$0xff]
        %v1900 = vld [vmem:[#allocation2 + $0x140] sm:$0xff]
        %v1901 = vld [vmem:[#allocation2 + $0x148] sm:$0xff]
        %v1902 = vld [vmem:[#allocation2 + $0x150] sm:$0xff]
        %v1903 = vld [vmem:[#allocation2 + $0x158] sm:$0xff]
        %v1904 = vld [vmem:[#allocation2 + $0x160] sm:$0xff]
        %v1905 = vld [vmem:[#allocation2 + $0x168] sm:$0xff]
        %v1906 = vld [vmem:[#allocation2 + $0x170] sm:$0xff]
        %v1907 = vld [vmem:[#allocation2 + $0x178] sm:$0xff]
        %v1908 = vld [vmem:[#allocation2 + $0x180] sm:$0xff]
        %v1909 = vld [vmem:[#allocation2 + $0x188] sm:$0xff]
        %v1910 = vld [vmem:[#allocation2 + $0x190] sm:$0xff]
        %v1911 = vld [vmem:[#allocation2 + $0x198] sm:$0xff]
        %v1912 = vld [vmem:[#allocation2 + $0x1a0] sm:$0xff]
        %v1913 = vld [vmem:[#allocation2 + $0x1a8] sm:$0xff]
        %v1914 = vld [vmem:[#allocation2 + $0x1b0] sm:$0xff]
        %v1915 = vld [vmem:[#allocation2 + $0x1b8] sm:$0xff]
        %v1916 = vld [vmem:[#allocation2 + $0x1c0] sm:$0xff]
        %v1917 = vld [vmem:[#allocation2 + $0x1c8] sm:$0xff]
        %v1918 = vld [vmem:[#allocation2 + $0x1d0] sm:$0xff]
        %v1919 = vld [vmem:[#allocation2 + $0x1d8] sm:$0xff]
        %v1920 = vld [vmem:[#allocation2 + $0x1e0] sm:$0xff]
        %v1921 = vld [vmem:[#allocation2 + $0x1e8] sm:$0xff]
        %v1922 = vld [vmem:[#allocation2 + $0x1f0] sm:$0xff]
        %v1923 = vld [vmem:[#allocation2 + $0x1f8] sm:$0xff]
        %v1924 = vld [vmem:[#allocation2 + $0x200] sm:$0xff]
        %v1925 = vld [vmem:[#allocation2 + $0x208] sm:$0xff]
        %v1926 = vld [vmem:[#allocation2 + $0x210] sm:$0xff]
        %v1927 = vld [vmem:[#allocation2 + $0x218] sm:$0xff]
        %v1928 = vld [vmem:[#allocation2 + $0x220] sm:$0xff]
        %v1929 = vld [vmem:[#allocation2 + $0x228] sm:$0xff]
        %v1930 = vld [vmem:[#allocation2 + $0x230] sm:$0xff]
        %v1931 = vld [vmem:[#allocation2 + $0x238] sm:$0xff]
        %v1932 = vld [vmem:[#allocation2 + $0x240] sm:$0xff]
        %v1933 = vld [vmem:[#allocation2 + $0x248] sm:$0xff]
        %v1934 = vld [vmem:[#allocation2 + $0x250] sm:$0xff]
        %v1935 = vld [vmem:[#allocation2 + $0x258] sm:$0xff]
        %v1936 = vld [vmem:[#allocation2 + $0x260] sm:$0xff]
        %v1937 = vld [vmem:[#allocation2 + $0x268] sm:$0xff]
        %v1938 = vld [vmem:[#allocation2 + $0x270] sm:$0xff]
        %v1939 = vld [vmem:[#allocation2 + $0x278] sm:$0xff]
        %v1940 = vld [vmem:[#allocation2 + $0x280] sm:$0xff]
        %v1941 = vld [vmem:[#allocation2 + $0x288] sm:$0xff]
        %v1942 = vld [vmem:[#allocation2 + $0x290] sm:$0xff]
        %v1943 = vld [vmem:[#allocation2 + $0x298] sm:$0xff]
        %v1944 = vld [vmem:[#allocation2 + $0x2a0] sm:$0xff]
        %v1945 = vld [vmem:[#allocation2 + $0x2a8] sm:$0xff]
        %v1946 = vld [vmem:[#allocation2 + $0x2b0] sm:$0xff]
        %v1947 = vld [vmem:[#allocation2 + $0x2b8] sm:$0xff]
        %v1948 = vld [vmem:[#allocation2 + $0x2c0] sm:$0xff]
        %v1949 = vld [vmem:[#allocation2 + $0x2c8] sm:$0xff]
        %v1950 = vld [vmem:[#allocation2 + $0x2d0] sm:$0xff]
        %v1951 = vld [vmem:[#allocation2 + $0x2d8] sm:$0xff]
        %v1952 = vld [vmem:[#allocation2 + $0x2e0] sm:$0xff]
        %v1953 = vld [vmem:[#allocation2 + $0x2e8] sm:$0xff]
        %v1954 = vld [vmem:[#allocation2 + $0x2f0] sm:$0xff]
        %v1955 = vld [vmem:[#allocation2 + $0x2f8] sm:$0xff]
        %v1956 = vld [vmem:[#allocation2 + $0x300] sm:$0xff]
        %v1957 = vld [vmem:[#allocation2 + $0x308] sm:$0xff]
        %v1958 = vld [vmem:[#allocation2 + $0x310] sm:$0xff]
        %v1959 = vld [vmem:[#allocation2 + $0x318] sm:$0xff]
        %v1960 = vld [vmem:[#allocation2 + $0x320] sm:$0xff]
        %v1961 = vld [vmem:[#allocation2 + $0x328] sm:$0xff]
        %v1962 = vld [vmem:[#allocation2 + $0x330] sm:$0xff]
        %v1963 = vld [vmem:[#allocation2 + $0x338] sm:$0xff]
        %v1964 = vld [vmem:[#allocation2 + $0x340] sm:$0xff]
        %v1965 = vld [vmem:[#allocation2 + $0x348] sm:$0xff]
        %v1966 = vld [vmem:[#allocation2 + $0x350] sm:$0xff]
        %v1967 = vld [vmem:[#allocation2 + $0x358] sm:$0xff]
        %v1968 = vld [vmem:[#allocation2 + $0x360] sm:$0xff]
        %v1969 = vld [vmem:[#allocation2 + $0x368] sm:$0xff]
        %v1970 = vld [vmem:[#allocation2 + $0x370] sm:$0xff]
        %v1971 = vld [vmem:[#allocation2 + $0x378] sm:$0xff]
        %v1972 = vld [vmem:[#allocation2 + $0x380] sm:$0xff]
        %v1973 = vld [vmem:[#allocation2 + $0x388] sm:$0xff]
        %v1974 = vld [vmem:[#allocation2 + $0x390] sm:$0xff]
        %v1975 = vld [vmem:[#allocation2 + $0x398] sm:$0xff]
        %v1976 = vld [vmem:[#allocation2 + $0x3a0] sm:$0xff]
        %v1977 = vld [vmem:[#allocation2 + $0x3a8] sm:$0xff]
        %v1978 = vld [vmem:[#allocation2 + $0x3b0] sm:$0xff]
        %v1979 = vld [vmem:[#allocation2 + $0x3b8] sm:$0xff]
        %v1980 = vld [vmem:[#allocation2 + $0x3c0] sm:$0xff]
        %v1981 = vld [vmem:[#allocation2 + $0x3c8] sm:$0xff]
        %v1982 = vld [vmem:[#allocation2 + $0x3d0] sm:$0xff]
        %v1983 = vld [vmem:[#allocation2 + $0x3d8] sm:$0xff]
        %v1984 = vld [vmem:[#allocation2 + $0x3e0] sm:$0xff]
        %v1985 = vld [vmem:[#allocation2 + $0x3e8] sm:$0xff]
        %v1986 = vld [vmem:[#allocation2 + $0x3f0] sm:$0xff]
        %v1987 = vld [vmem:[#allocation2 + $0x3f8] sm:$0xff]
        %v1988 = vld [vmem:[%s4] sm:$0xf]
        %v1990 = vlaneseq
        %v1991 = vshrl.u32 %v1990, 7
        %v1992 = vsub.s32 0, %v1991
        %v1993 = vrot.slane %v1988, %v1992
        %v1994 = vlaneseq
        %v1995 = vshrl.u32 %v1994, 7
        %v1996 = vsub.s32 1, %v1995
        %v1997 = vrot.slane %v1988, %v1996
        %v1998 = vlaneseq
        %v1999 = vshrl.u32 %v1998, 7
        %v2000 = vsub.s32 2, %v1999
        %v2001 = vrot.slane %v1988, %v2000
        %v2002 = vlaneseq
        %v2003 = vshrl.u32 %v2002, 7
        %v2004 = vsub.s32 3, %v2003
        %v2005 = vrot.slane %v1988, %v2004
        %v2138 = vunpack.c.l.b16 %v1860
        %v2139 = vunpack.c.h.b16 %v1860
        %v2140 = vunpack.c.l.b16 %v1861
        %v2141 = vunpack.c.h.b16 %v1861
        %v2142 = vunpack.c.l.b16 %v1862
        %v2143 = vunpack.c.h.b16 %v1862
        %v2144 = vunpack.c.l.b16 %v1863
        %v2145 = vunpack.c.h.b16 %v1863
        %v2146 = vunpack.c.l.b16 %v1864
        %v2147 = vunpack.c.h.b16 %v1864
        %v2148 = vunpack.c.l.b16 %v1865
        %v2149 = vunpack.c.h.b16 %v1865
        %v2150 = vunpack.c.l.b16 %v1866
        %v2151 = vunpack.c.h.b16 %v1866
        %v2152 = vunpack.c.l.b16 %v1867
        %v2153 = vunpack.c.h.b16 %v1867
        %v2154 = vunpack.c.l.b16 %v1868
        %v2155 = vunpack.c.h.b16 %v1868
        %v2156 = vunpack.c.l.b16 %v1869
        %v2157 = vunpack.c.h.b16 %v1869
        %v2158 = vunpack.c.l.b16 %v1870
        %v2159 = vunpack.c.h.b16 %v1870
        %v2160 = vunpack.c.l.b16 %v1871
        %v2161 = vunpack.c.h.b16 %v1871
        %v2162 = vunpack.c.l.b16 %v1872
        %v2163 = vunpack.c.h.b16 %v1872
        %v2164 = vunpack.c.l.b16 %v1873
        %v2165 = vunpack.c.h.b16 %v1873
        %v2166 = vunpack.c.l.b16 %v1874
        %v2167 = vunpack.c.h.b16 %v1874
        %v2168 = vunpack.c.l.b16 %v1875
        %v2169 = vunpack.c.h.b16 %v1875
        %v2170 = vunpack.c.l.b16 %v1876
        %v2171 = vunpack.c.h.b16 %v1876
        %v2172 = vunpack.c.l.b16 %v1877
        %v2173 = vunpack.c.h.b16 %v1877
        %v2174 = vunpack.c.l.b16 %v1878
        %v2175 = vunpack.c.h.b16 %v1878
        %v2176 = vunpack.c.l.b16 %v1879
        %v2177 = vunpack.c.h.b16 %v1879
        %v2178 = vunpack.c.l.b16 %v1880
        %v2179 = vunpack.c.h.b16 %v1880
        %v2180 = vunpack.c.l.b16 %v1881
        %v2181 = vunpack.c.h.b16 %v1881
        %v2182 = vunpack.c.l.b16 %v1882
        %v2183 = vunpack.c.h.b16 %v1882
        %v2184 = vunpack.c.l.b16 %v1883
        %v2185 = vunpack.c.h.b16 %v1883
        %v2186 = vunpack.c.l.b16 %v1884
        %v2187 = vunpack.c.h.b16 %v1884
        %v2188 = vunpack.c.l.b16 %v1885
        %v2189 = vunpack.c.h.b16 %v1885
        %v2190 = vunpack.c.l.b16 %v1886
        %v2191 = vunpack.c.h.b16 %v1886
        %v2192 = vunpack.c.l.b16 %v1887
        %v2193 = vunpack.c.h.b16 %v1887
        %v2194 = vunpack.c.l.b16 %v1888
        %v2195 = vunpack.c.h.b16 %v1888
        %v2196 = vunpack.c.l.b16 %v1889
        %v2197 = vunpack.c.h.b16 %v1889
        %v2198 = vunpack.c.l.b16 %v1890
        %v2199 = vunpack.c.h.b16 %v1890
        %v2200 = vunpack.c.l.b16 %v1891
        %v2201 = vunpack.c.h.b16 %v1891
        %v2202 = vunpack.c.l.b16 %v1892
        %v2203 = vunpack.c.h.b16 %v1892
        %v2204 = vunpack.c.l.b16 %v1893
        %v2205 = vunpack.c.h.b16 %v1893
        %v2206 = vunpack.c.l.b16 %v1894
        %v2207 = vunpack.c.h.b16 %v1894
        %v2208 = vunpack.c.l.b16 %v1895
        %v2209 = vunpack.c.h.b16 %v1895
        %v2210 = vunpack.c.l.b16 %v1896
        %v2211 = vunpack.c.h.b16 %v1896
        %v2212 = vunpack.c.l.b16 %v1897
        %v2213 = vunpack.c.h.b16 %v1897
        %v2214 = vunpack.c.l.b16 %v1898
        %v2215 = vunpack.c.h.b16 %v1898
        %v2216 = vunpack.c.l.b16 %v1899
        %v2217 = vunpack.c.h.b16 %v1899
        %v2218 = vunpack.c.l.b16 %v1900
        %v2219 = vunpack.c.h.b16 %v1900
        %v2220 = vunpack.c.l.b16 %v1901
        %v2221 = vunpack.c.h.b16 %v1901
        %v2222 = vunpack.c.l.b16 %v1902
        %v2223 = vunpack.c.h.b16 %v1902
        %v2224 = vunpack.c.l.b16 %v1903
        %v2225 = vunpack.c.h.b16 %v1903
        %v2226 = vunpack.c.l.b16 %v1904
        %v2227 = vunpack.c.h.b16 %v1904
        %v2228 = vunpack.c.l.b16 %v1905
        %v2229 = vunpack.c.h.b16 %v1905
        %v2230 = vunpack.c.l.b16 %v1906
        %v2231 = vunpack.c.h.b16 %v1906
        %v2232 = vunpack.c.l.b16 %v1907
        %v2233 = vunpack.c.h.b16 %v1907
        %v2234 = vunpack.c.l.b16 %v1908
        %v2235 = vunpack.c.h.b16 %v1908
        %v2236 = vunpack.c.l.b16 %v1909
        %v2237 = vunpack.c.h.b16 %v1909
        %v2238 = vunpack.c.l.b16 %v1910
        %v2239 = vunpack.c.h.b16 %v1910
        %v2240 = vunpack.c.l.b16 %v1911
        %v2241 = vunpack.c.h.b16 %v1911
        %v2242 = vunpack.c.l.b16 %v1912
        %v2243 = vunpack.c.h.b16 %v1912
        %v2244 = vunpack.c.l.b16 %v1913
        %v2245 = vunpack.c.h.b16 %v1913
        %v2246 = vunpack.c.l.b16 %v1914
        %v2247 = vunpack.c.h.b16 %v1914
        %v2248 = vunpack.c.l.b16 %v1915
        %v2249 = vunpack.c.h.b16 %v1915
        %v2250 = vunpack.c.l.b16 %v1916
        %v2251 = vunpack.c.h.b16 %v1916
        %v2252 = vunpack.c.l.b16 %v1917
        %v2253 = vunpack.c.h.b16 %v1917
        %v2254 = vunpack.c.l.b16 %v1918
        %v2255 = vunpack.c.h.b16 %v1918
        %v2256 = vunpack.c.l.b16 %v1919
        %v2257 = vunpack.c.h.b16 %v1919
        %v2258 = vunpack.c.l.b16 %v1920
        %v2259 = vunpack.c.h.b16 %v1920
        %v2260 = vunpack.c.l.b16 %v1921
        %v2261 = vunpack.c.h.b16 %v1921
        %v2262 = vunpack.c.l.b16 %v1922
        %v2263 = vunpack.c.h.b16 %v1922
        %v2264 = vunpack.c.l.b16 %v1923
        %v2265 = vunpack.c.h.b16 %v1923
        %v2266 = vunpack.c.l.b16 %v1924
        %v2267 = vunpack.c.h.b16 %v1924
        %v2268 = vunpack.c.l.b16 %v1925
        %v2269 = vunpack.c.h.b16 %v1925
        %v2270 = vunpack.c.l.b16 %v1926
        %v2271 = vunpack.c.h.b16 %v1926
        %v2272 = vunpack.c.l.b16 %v1927
        %v2273 = vunpack.c.h.b16 %v1927
        %v2274 = vunpack.c.l.b16 %v1928
        %v2275 = vunpack.c.h.b16 %v1928
        %v2276 = vunpack.c.l.b16 %v1929
        %v2277 = vunpack.c.h.b16 %v1929
        %v2278 = vunpack.c.l.b16 %v1930
        %v2279 = vunpack.c.h.b16 %v1930
        %v2280 = vunpack.c.l.b16 %v1931
        %v2281 = vunpack.c.h.b16 %v1931
        %v2282 = vunpack.c.l.b16 %v1932
        %v2283 = vunpack.c.h.b16 %v1932
        %v2284 = vunpack.c.l.b16 %v1933
        %v2285 = vunpack.c.h.b16 %v1933
        %v2286 = vunpack.c.l.b16 %v1934
        %v2287 = vunpack.c.h.b16 %v1934
        %v2288 = vunpack.c.l.b16 %v1935
        %v2289 = vunpack.c.h.b16 %v1935
        %v2290 = vunpack.c.l.b16 %v1936
        %v2291 = vunpack.c.h.b16 %v1936
        %v2292 = vunpack.c.l.b16 %v1937
        %v2293 = vunpack.c.h.b16 %v1937
        %v2294 = vunpack.c.l.b16 %v1938
        %v2295 = vunpack.c.h.b16 %v1938
        %v2296 = vunpack.c.l.b16 %v1939
        %v2297 = vunpack.c.h.b16 %v1939
        %v2298 = vunpack.c.l.b16 %v1940
        %v2299 = vunpack.c.h.b16 %v1940
        %v2300 = vunpack.c.l.b16 %v1941
        %v2301 = vunpack.c.h.b16 %v1941
        %v2302 = vunpack.c.l.b16 %v1942
        %v2303 = vunpack.c.h.b16 %v1942
        %v2304 = vunpack.c.l.b16 %v1943
        %v2305 = vunpack.c.h.b16 %v1943
        %v2306 = vunpack.c.l.b16 %v1944
        %v2307 = vunpack.c.h.b16 %v1944
        %v2308 = vunpack.c.l.b16 %v1945
        %v2309 = vunpack.c.h.b16 %v1945
        %v2310 = vunpack.c.l.b16 %v1946
        %v2311 = vunpack.c.h.b16 %v1946
        %v2312 = vunpack.c.l.b16 %v1947
        %v2313 = vunpack.c.h.b16 %v1947
        %v2314 = vunpack.c.l.b16 %v1948
        %v2315 = vunpack.c.h.b16 %v1948
        %v2316 = vunpack.c.l.b16 %v1949
        %v2317 = vunpack.c.h.b16 %v1949
        %v2318 = vunpack.c.l.b16 %v1950
        %v2319 = vunpack.c.h.b16 %v1950
        %v2320 = vunpack.c.l.b16 %v1951
        %v2321 = vunpack.c.h.b16 %v1951
        %v2322 = vunpack.c.l.b16 %v1952
        %v2323 = vunpack.c.h.b16 %v1952
        %v2324 = vunpack.c.l.b16 %v1953
        %v2325 = vunpack.c.h.b16 %v1953
        %v2326 = vunpack.c.l.b16 %v1954
        %v2327 = vunpack.c.h.b16 %v1954
        %v2328 = vunpack.c.l.b16 %v1955
        %v2329 = vunpack.c.h.b16 %v1955
        %v2330 = vunpack.c.l.b16 %v1956
        %v2331 = vunpack.c.h.b16 %v1956
        %v2332 = vunpack.c.l.b16 %v1957
        %v2333 = vunpack.c.h.b16 %v1957
        %v2334 = vunpack.c.l.b16 %v1958
        %v2335 = vunpack.c.h.b16 %v1958
        %v2336 = vunpack.c.l.b16 %v1959
        %v2337 = vunpack.c.h.b16 %v1959
        %v2338 = vunpack.c.l.b16 %v1960
        %v2339 = vunpack.c.h.b16 %v1960
        %v2340 = vunpack.c.l.b16 %v1961
        %v2341 = vunpack.c.h.b16 %v1961
        %v2342 = vunpack.c.l.b16 %v1962
        %v2343 = vunpack.c.h.b16 %v1962
        %v2344 = vunpack.c.l.b16 %v1963
        %v2345 = vunpack.c.h.b16 %v1963
        %v2346 = vunpack.c.l.b16 %v1964
        %v2347 = vunpack.c.h.b16 %v1964
        %v2348 = vunpack.c.l.b16 %v1965
        %v2349 = vunpack.c.h.b16 %v1965
        %v2350 = vunpack.c.l.b16 %v1966
        %v2351 = vunpack.c.h.b16 %v1966
        %v2352 = vunpack.c.l.b16 %v1967
        %v2353 = vunpack.c.h.b16 %v1967
        %v2354 = vunpack.c.l.b16 %v1968
        %v2355 = vunpack.c.h.b16 %v1968
        %v2356 = vunpack.c.l.b16 %v1969
        %v2357 = vunpack.c.h.b16 %v1969
        %v2358 = vunpack.c.l.b16 %v1970
        %v2359 = vunpack.c.h.b16 %v1970
        %v2360 = vunpack.c.l.b16 %v1971
        %v2361 = vunpack.c.h.b16 %v1971
        %v2362 = vunpack.c.l.b16 %v1972
        %v2363 = vunpack.c.h.b16 %v1972
        %v2364 = vunpack.c.l.b16 %v1973
        %v2365 = vunpack.c.h.b16 %v1973
        %v2366 = vunpack.c.l.b16 %v1974
        %v2367 = vunpack.c.h.b16 %v1974
        %v2368 = vunpack.c.l.b16 %v1975
        %v2369 = vunpack.c.h.b16 %v1975
        %v2370 = vunpack.c.l.b16 %v1976
        %v2371 = vunpack.c.h.b16 %v1976
        %v2372 = vunpack.c.l.b16 %v1977
        %v2373 = vunpack.c.h.b16 %v1977
        %v2374 = vunpack.c.l.b16 %v1978
        %v2375 = vunpack.c.h.b16 %v1978
        %v2376 = vunpack.c.l.b16 %v1979
        %v2377 = vunpack.c.h.b16 %v1979
        %v2378 = vunpack.c.l.b16 %v1980
        %v2379 = vunpack.c.h.b16 %v1980
        %v2380 = vunpack.c.l.b16 %v1981
        %v2381 = vunpack.c.h.b16 %v1981
        %v2382 = vunpack.c.l.b16 %v1982
        %v2383 = vunpack.c.h.b16 %v1982
        %v2384 = vunpack.c.l.b16 %v1983
        %v2385 = vunpack.c.h.b16 %v1983
        %v2386 = vunpack.c.l.b16 %v1984
        %v2387 = vunpack.c.h.b16 %v1984
        %v2388 = vunpack.c.l.b16 %v1985
        %v2389 = vunpack.c.h.b16 %v1985
        %v2390 = vunpack.c.l.b16 %v1986
        %v2391 = vunpack.c.h.b16 %v1986
        %v2392 = vunpack.c.l.b16 %v1987
        %v2393 = vunpack.c.h.b16 %v1987
        %v2394 = vpack.c.b16 %v2142, %v2138
        %v2395 = vpack.c.b16 %v2143, %v2139
        %v2396 = vpack.c.b16 %v2144, %v2140
        %v2397 = vpack.c.b16 %v2145, %v2141
        %v2398 = vpack.c.b16 %v2150, %v2146
        %v2399 = vpack.c.b16 %v2151, %v2147
        %v2400 = vpack.c.b16 %v2152, %v2148
        %v2401 = vpack.c.b16 %v2153, %v2149
        %v2402 = vpack.c.b16 %v2158, %v2154
        %v2403 = vpack.c.b16 %v2159, %v2155
        %v2404 = vpack.c.b16 %v2160, %v2156
        %v2405 = vpack.c.b16 %v2161, %v2157
        %v2406 = vpack.c.b16 %v2166, %v2162
        %v2407 = vpack.c.b16 %v2167, %v2163
        %v2408 = vpack.c.b16 %v2168, %v2164
        %v2409 = vpack.c.b16 %v2169, %v2165
        %v2410 = vpack.c.b16 %v2174, %v2170
        %v2411 = vpack.c.b16 %v2175, %v2171
        %v2412 = vpack.c.b16 %v2176, %v2172
        %v2413 = vpack.c.b16 %v2177, %v2173
        %v2414 = vpack.c.b16 %v2182, %v2178
        %v2415 = vpack.c.b16 %v2183, %v2179
        %v2416 = vpack.c.b16 %v2184, %v2180
        %v2417 = vpack.c.b16 %v2185, %v2181
        %v2418 = vpack.c.b16 %v2190, %v2186
        %v2419 = vpack.c.b16 %v2191, %v2187
        %v2420 = vpack.c.b16 %v2192, %v2188
        %v2421 = vpack.c.b16 %v2193, %v2189
        %v2422 = vpack.c.b16 %v2198, %v2194
        %v2423 = vpack.c.b16 %v2199, %v2195
        %v2424 = vpack.c.b16 %v2200, %v2196
        %v2425 = vpack.c.b16 %v2201, %v2197
        %v2426 = vpack.c.b16 %v2206, %v2202
        %v2427 = vpack.c.b16 %v2207, %v2203
        %v2428 = vpack.c.b16 %v2208, %v2204
        %v2429 = vpack.c.b16 %v2209, %v2205
        %v2430 = vpack.c.b16 %v2214, %v2210
        %v2431 = vpack.c.b16 %v2215, %v2211
        %v2432 = vpack.c.b16 %v2216, %v2212
        %v2433 = vpack.c.b16 %v2217, %v2213
        %v2434 = vpack.c.b16 %v2222, %v2218
        %v2435 = vpack.c.b16 %v2223, %v2219
        %v2436 = vpack.c.b16 %v2224, %v2220
        %v2437 = vpack.c.b16 %v2225, %v2221
        %v2438 = vpack.c.b16 %v2230, %v2226
        %v2439 = vpack.c.b16 %v2231, %v2227
        %v2440 = vpack.c.b16 %v2232, %v2228
        %v2441 = vpack.c.b16 %v2233, %v2229
        %v2442 = vpack.c.b16 %v2238, %v2234
        %v2443 = vpack.c.b16 %v2239, %v2235
        %v2444 = vpack.c.b16 %v2240, %v2236
        %v2445 = vpack.c.b16 %v2241, %v2237
        %v2446 = vpack.c.b16 %v2246, %v2242
        %v2447 = vpack.c.b16 %v2247, %v2243
        %v2448 = vpack.c.b16 %v2248, %v2244
        %v2449 = vpack.c.b16 %v2249, %v2245
        %v2450 = vpack.c.b16 %v2254, %v2250
        %v2451 = vpack.c.b16 %v2255, %v2251
        %v2452 = vpack.c.b16 %v2256, %v2252
        %v2453 = vpack.c.b16 %v2257, %v2253
        %v2454 = vpack.c.b16 %v2262, %v2258
        %v2455 = vpack.c.b16 %v2263, %v2259
        %v2456 = vpack.c.b16 %v2264, %v2260
        %v2457 = vpack.c.b16 %v2265, %v2261
        %v2458 = vpack.c.b16 %v2270, %v2266
        %v2459 = vpack.c.b16 %v2271, %v2267
        %v2460 = vpack.c.b16 %v2272, %v2268
        %v2461 = vpack.c.b16 %v2273, %v2269
        %v2462 = vpack.c.b16 %v2278, %v2274
        %v2463 = vpack.c.b16 %v2279, %v2275
        %v2464 = vpack.c.b16 %v2280, %v2276
        %v2465 = vpack.c.b16 %v2281, %v2277
        %v2466 = vpack.c.b16 %v2286, %v2282
        %v2467 = vpack.c.b16 %v2287, %v2283
        %v2468 = vpack.c.b16 %v2288, %v2284
        %v2469 = vpack.c.b16 %v2289, %v2285
        %v2470 = vpack.c.b16 %v2294, %v2290
        %v2471 = vpack.c.b16 %v2295, %v2291
        %v2472 = vpack.c.b16 %v2296, %v2292
        %v2473 = vpack.c.b16 %v2297, %v2293
        %v2474 = vpack.c.b16 %v2302, %v2298
        %v2475 = vpack.c.b16 %v2303, %v2299
        %v2476 = vpack.c.b16 %v2304, %v2300
        %v2477 = vpack.c.b16 %v2305, %v2301
        %v2478 = vpack.c.b16 %v2310, %v2306
        %v2479 = vpack.c.b16 %v2311, %v2307
        %v2480 = vpack.c.b16 %v2312, %v2308
        %v2481 = vpack.c.b16 %v2313, %v2309
        %v2482 = vpack.c.b16 %v2318, %v2314
        %v2483 = vpack.c.b16 %v2319, %v2315
        %v2484 = vpack.c.b16 %v2320, %v2316
        %v2485 = vpack.c.b16 %v2321, %v2317
        %v2486 = vpack.c.b16 %v2326, %v2322
        %v2487 = vpack.c.b16 %v2327, %v2323
        %v2488 = vpack.c.b16 %v2328, %v2324
        %v2489 = vpack.c.b16 %v2329, %v2325
        %v2490 = vpack.c.b16 %v2334, %v2330
        %v2491 = vpack.c.b16 %v2335, %v2331
        %v2492 = vpack.c.b16 %v2336, %v2332
        %v2493 = vpack.c.b16 %v2337, %v2333
        %v2494 = vpack.c.b16 %v2342, %v2338
        %v2495 = vpack.c.b16 %v2343, %v2339
        %v2496 = vpack.c.b16 %v2344, %v2340
        %v2497 = vpack.c.b16 %v2345, %v2341
        %v2498 = vpack.c.b16 %v2350, %v2346
        %v2499 = vpack.c.b16 %v2351, %v2347
        %v2500 = vpack.c.b16 %v2352, %v2348
        %v2501 = vpack.c.b16 %v2353, %v2349
        %v2502 = vpack.c.b16 %v2358, %v2354
        %v2503 = vpack.c.b16 %v2359, %v2355
        %v2504 = vpack.c.b16 %v2360, %v2356
        %v2505 = vpack.c.b16 %v2361, %v2357
        %v2506 = vpack.c.b16 %v2366, %v2362
        %v2507 = vpack.c.b16 %v2367, %v2363
        %v2508 = vpack.c.b16 %v2368, %v2364
        %v2509 = vpack.c.b16 %v2369, %v2365
        %v2510 = vpack.c.b16 %v2374, %v2370
        %v2511 = vpack.c.b16 %v2375, %v2371
        %v2512 = vpack.c.b16 %v2376, %v2372
        %v2513 = vpack.c.b16 %v2377, %v2373
        %v2514 = vpack.c.b16 %v2382, %v2378
        %v2515 = vpack.c.b16 %v2383, %v2379
        %v2516 = vpack.c.b16 %v2384, %v2380
        %v2517 = vpack.c.b16 %v2385, %v2381
        %v2518 = vpack.c.b16 %v2390, %v2386
        %v2519 = vpack.c.b16 %v2391, %v2387
        %v2520 = vpack.c.b16 %v2392, %v2388
        %v2521 = vpack.c.b16 %v2393, %v2389
        %2650 = vmatprep.subr.bf16.mxu0 %v2423
        %2651 = vmatpush1.bf16.msra.mxu0 %v2422
        %2652 = vmatprep.subr.bf16.mxu0 %v2419
        %2653 = vmatpush1.bf16.msra.mxu0 %v2418
        %2654 = vmatprep.subr.bf16.mxu0 %v2415
        %2655 = vmatpush1.bf16.msra.mxu0 %v2414
        %2656 = vmatprep.subr.bf16.mxu0 %v2411
        %2657 = vmatpush1.bf16.msra.mxu0 %v2410
        %2658 = vmatprep.subr.bf16.mxu0 %v2407
        %2659 = vmatpush1.bf16.msra.mxu0 %v2406
        %2660 = vmatprep.subr.bf16.mxu0 %v2403
        %2661 = vmatpush1.bf16.msra.mxu0 %v2402
        %2662 = vmatprep.subr.bf16.mxu0 %v2399
        %2663 = vmatpush1.bf16.msra.mxu0 %v2398
        %2664 = vmatprep.subr.bf16.mxu0 %v2395
        %2665 = vmatpush1.bf16.msra.mxu0 %v2394
        %2666 = vmatprep.subr.bf16.mxu0 %v2455
        %2667 = vmatpush2.bf16.msra.mxu0 %v2454
        %2668 = vmatprep.subr.bf16.mxu0 %v2451
        %2669 = vmatpush2.bf16.msra.mxu0 %v2450
        %2670 = vmatprep.subr.bf16.mxu0 %v2447
        %2671 = vmatpush2.bf16.msra.mxu0 %v2446
        %2672 = vmatprep.subr.bf16.mxu0 %v2443
        %2673 = vmatpush2.bf16.msra.mxu0 %v2442
        %2674 = vmatprep.subr.bf16.mxu0 %v2439
        %2675 = vmatpush2.bf16.msra.mxu0 %v2438
        %2676 = vmatprep.subr.bf16.mxu0 %v2435
        %2677 = vmatpush2.bf16.msra.mxu0 %v2434
        %2678 = vmatprep.subr.bf16.mxu0 %v2431
        %2679 = vmatpush2.bf16.msra.mxu0 %v2430
        %2680 = vmatprep.subr.bf16.mxu0 %v2427
        %2681 = vmatpush2.bf16.msra.mxu0 %v2426
        %2682 = vmatprep.mubr.bf16.mxu0 %v1857
        %2683 = vmatmul.mubr.bf16.gmra.mxu0 %v1856
        %v2684 = vpop.f32.mrf.mxu0
        %v2685 = vadd.f32 %v1993, %v2684
        %v2686 = vpop.f32.mrf.mxu0
        %v2687 = vadd.f32 %v1997, %v2686
        %v2688 = vpop.f32.mrf.mxu0
        %v2689 = vpop.f32.mrf.mxu0
        %2690 = vdwg.mxu0
        %2691 = vmatprep.subr.bf16.mxu0 %v2487
        %2692 = vmatpush1.bf16.msra.mxu0 %v2486
        %2693 = vmatprep.subr.bf16.mxu0 %v2483
        %2694 = vmatpush1.bf16.msra.mxu0 %v2482
        %2695 = vmatprep.subr.bf16.mxu0 %v2479
        %2696 = vmatpush1.bf16.msra.mxu0 %v2478
        %2697 = vmatprep.subr.bf16.mxu0 %v2475
        %2698 = vmatpush1.bf16.msra.mxu0 %v2474
        %2699 = vmatprep.subr.bf16.mxu0 %v2471
        %2700 = vmatpush1.bf16.msra.mxu0 %v2470
        %2701 = vmatprep.subr.bf16.mxu0 %v2467
        %2702 = vmatpush1.bf16.msra.mxu0 %v2466
        %2703 = vmatprep.subr.bf16.mxu0 %v2463
        %2704 = vmatpush1.bf16.msra.mxu0 %v2462
        %2705 = vmatprep.subr.bf16.mxu0 %v2459
        %2706 = vmatpush1.bf16.msra.mxu0 %v2458
        %2707 = vmatprep.subr.bf16.mxu0 %v2519
        %2708 = vmatpush2.bf16.msra.mxu0 %v2518
        %2709 = vmatprep.subr.bf16.mxu0 %v2515
        %2710 = vmatpush2.bf16.msra.mxu0 %v2514
        %2711 = vmatprep.subr.bf16.mxu0 %v2511
        %2712 = vmatpush2.bf16.msra.mxu0 %v2510
        %2713 = vmatprep.subr.bf16.mxu0 %v2507
        %2714 = vmatpush2.bf16.msra.mxu0 %v2506
        %2715 = vmatprep.subr.bf16.mxu0 %v2503
        %2716 = vmatpush2.bf16.msra.mxu0 %v2502
        %2717 = vmatprep.subr.bf16.mxu0 %v2499
        %2718 = vmatpush2.bf16.msra.mxu0 %v2498
        %2719 = vmatprep.subr.bf16.mxu0 %v2495
        %2720 = vmatpush2.bf16.msra.mxu0 %v2494
        %2721 = vmatprep.subr.bf16.mxu0 %v2491
        %2722 = vmatpush2.bf16.msra.mxu0 %v2490
        %2723 = vmatprep.mubr.bf16.mxu0 %v1859
        %2724 = vmatmul.mubr.bf16.gmra.mxu0 %v1858
        %v2725 = vpop.f32.mrf.mxu0
        %v2726 = vadd.f32 %v2685, %v2725
        %v2727 = vpop.f32.mrf.mxu0
        %v2728 = vadd.f32 %v2687, %v2727
        %v2729 = vpop.f32.mrf.mxu0
        %v2730 = vpop.f32.mrf.mxu0
        %2731 = vdwg.mxu0
        %2732 = vmatprep.subr.bf16.mxu0 %v2425
        %2733 = vmatpush1.bf16.msra.mxu0 %v2424
        %2734 = vmatprep.subr.bf16.mxu0 %v2421
        %2735 = vmatpush1.bf16.msra.mxu0 %v2420
        %2736 = vmatprep.subr.bf16.mxu0 %v2417
        %2737 = vmatpush1.bf16.msra.mxu0 %v2416
        %2738 = vmatprep.subr.bf16.mxu0 %v2413
        %2739 = vmatpush1.bf16.msra.mxu0 %v2412
        %2740 = vmatprep.subr.bf16.mxu0 %v2409
        %2741 = vmatpush1.bf16.msra.mxu0 %v2408
        %2742 = vmatprep.subr.bf16.mxu0 %v2405
        %2743 = vmatpush1.bf16.msra.mxu0 %v2404
        %2744 = vmatprep.subr.bf16.mxu0 %v2401
        %2745 = vmatpush1.bf16.msra.mxu0 %v2400
        %2746 = vmatprep.subr.bf16.mxu0 %v2397
        %2747 = vmatpush1.bf16.msra.mxu0 %v2396
        %2748 = vmatprep.subr.bf16.mxu0 %v2457
        %2749 = vmatpush2.bf16.msra.mxu0 %v2456
        %2750 = vmatprep.subr.bf16.mxu0 %v2453
        %2751 = vmatpush2.bf16.msra.mxu0 %v2452
        %2752 = vmatprep.subr.bf16.mxu0 %v2449
        %2753 = vmatpush2.bf16.msra.mxu0 %v2448
        %2754 = vmatprep.subr.bf16.mxu0 %v2445
        %2755 = vmatpush2.bf16.msra.mxu0 %v2444
        %2756 = vmatprep.subr.bf16.mxu0 %v2441
        %2757 = vmatpush2.bf16.msra.mxu0 %v2440
        %2758 = vmatprep.subr.bf16.mxu0 %v2437
        %2759 = vmatpush2.bf16.msra.mxu0 %v2436
        %2760 = vmatprep.subr.bf16.mxu0 %v2433
        %2761 = vmatpush2.bf16.msra.mxu0 %v2432
        %2762 = vmatprep.subr.bf16.mxu0 %v2429
        %2763 = vmatpush2.bf16.msra.mxu0 %v2428
        %2764 = vmatprep.mubr.bf16.mxu0 %v1857
        %2765 = vmatmul.mubr.bf16.gmra.mxu0 %v1856
        %v2766 = vpop.f32.mrf.mxu0
        %v2767 = vadd.f32 %v2001, %v2766
        %v2768 = vpop.f32.mrf.mxu0
        %v2769 = vadd.f32 %v2005, %v2768
        %v2770 = vpop.f32.mrf.mxu0
        %v2771 = vpop.f32.mrf.mxu0
        %2772 = vdwg.mxu0
        %2773 = vmatprep.subr.bf16.mxu0 %v2489
        %2774 = vmatpush1.bf16.msra.mxu0 %v2488
        %2775 = vmatprep.subr.bf16.mxu0 %v2485
        %2776 = vmatpush1.bf16.msra.mxu0 %v2484
        %2777 = vmatprep.subr.bf16.mxu0 %v2481
        %2778 = vmatpush1.bf16.msra.mxu0 %v2480
        %2779 = vmatprep.subr.bf16.mxu0 %v2477
        %2780 = vmatpush1.bf16.msra.mxu0 %v2476
        %2781 = vmatprep.subr.bf16.mxu0 %v2473
        %2782 = vmatpush1.bf16.msra.mxu0 %v2472
        %2783 = vmatprep.subr.bf16.mxu0 %v2469
        %2784 = vmatpush1.bf16.msra.mxu0 %v2468
        %2785 = vmatprep.subr.bf16.mxu0 %v2465
        %2786 = vmatpush1.bf16.msra.mxu0 %v2464
        %2787 = vmatprep.subr.bf16.mxu0 %v2461
        %2788 = vmatpush1.bf16.msra.mxu0 %v2460
        %2789 = vmatprep.subr.bf16.mxu0 %v2521
        %2790 = vmatpush2.bf16.msra.mxu0 %v2520
        %2791 = vmatprep.subr.bf16.mxu0 %v2517
        %2792 = vmatpush2.bf16.msra.mxu0 %v2516
        %2793 = vmatprep.subr.bf16.mxu0 %v2513
        %2794 = vmatpush2.bf16.msra.mxu0 %v2512
        %2795 = vmatprep.subr.bf16.mxu0 %v2509
        %2796 = vmatpush2.bf16.msra.mxu0 %v2508
        %2797 = vmatprep.subr.bf16.mxu0 %v2505
        %2798 = vmatpush2.bf16.msra.mxu0 %v2504
        %2799 = vmatprep.subr.bf16.mxu0 %v2501
        %2800 = vmatpush2.bf16.msra.mxu0 %v2500
        %2801 = vmatprep.subr.bf16.mxu0 %v2497
        %2802 = vmatpush2.bf16.msra.mxu0 %v2496
        %2803 = vmatprep.subr.bf16.mxu0 %v2493
        %2804 = vmatpush2.bf16.msra.mxu0 %v2492
        %2805 = vmatprep.mubr.bf16.mxu0 %v1859
        %2806 = vmatmul.mubr.bf16.gmra.mxu0 %v1858
        %v2807 = vpop.f32.mrf.mxu0
        %v2808 = vadd.f32 %v2767, %v2807
        %v2809 = vpop.f32.mrf.mxu0
        %v2810 = vadd.f32 %v2769, %v2809
        %v2811 = vpop.f32.mrf.mxu0
        %v2812 = vpop.f32.mrf.mxu0
        %2813 = vdwg.mxu0
        %v2814 = vmax.f32 %v2726, 0.0
        %v2815 = vmax.f32 %v2728, 0.0
        %v2816 = vmax.f32 %v2808, 0.0
        %v2817 = vmax.f32 %v2810, 0.0
        %v2818 = vpack.c.bf16 %v2814, %v2814
        %v2819 = vpack.c.bf16 %v2815, %v2815
        %v2820 = vpack.c.bf16 %v2816, %v2816
        %v2821 = vpack.c.bf16 %v2817, %v2817
        %v2822 = vld [vmem:[#allocation5] sm:$0xf]
        %v2823 = vld [vmem:[#allocation5 + $0x4] sm:$0xf]
        %v2824 = vld [vmem:[#allocation5 + $0x8] sm:$0xf]
        %v2825 = vld [vmem:[#allocation5 + $0xc] sm:$0xf]
        %v2826 = vld [vmem:[#allocation5 + $0x10] sm:$0xf]
        %v2827 = vld [vmem:[#allocation5 + $0x14] sm:$0xf]
        %v2828 = vld [vmem:[#allocation5 + $0x18] sm:$0xf]
        %v2829 = vld [vmem:[#allocation5 + $0x1c] sm:$0xf]
        %v2830 = vld [vmem:[#allocation5 + $0x20] sm:$0xf]
        %v2831 = vld [vmem:[#allocation5 + $0x24] sm:$0xf]
        %v2832 = vld [vmem:[#allocation5 + $0x28] sm:$0xf]
        %v2833 = vld [vmem:[#allocation5 + $0x2c] sm:$0xf]
        %v2834 = vld [vmem:[#allocation5 + $0x30] sm:$0xf]
        %v2835 = vld [vmem:[#allocation5 + $0x34] sm:$0xf]
        %v2836 = vld [vmem:[#allocation5 + $0x38] sm:$0xf]
        %v2837 = vld [vmem:[#allocation5 + $0x3c] sm:$0xf]
        %v2838 = vld [vmem:[#allocation5 + $0x40] sm:$0xf]
        %v2839 = vld [vmem:[#allocation5 + $0x44] sm:$0xf]
        %v2840 = vld [vmem:[#allocation5 + $0x48] sm:$0xf]
        %v2841 = vld [vmem:[#allocation5 + $0x4c] sm:$0xf]
        %v2842 = vld [vmem:[#allocation5 + $0x50] sm:$0xf]
        %v2843 = vld [vmem:[#allocation5 + $0x54] sm:$0xf]
        %v2844 = vld [vmem:[#allocation5 + $0x58] sm:$0xf]
        %v2845 = vld [vmem:[#allocation5 + $0x5c] sm:$0xf]
        %v2846 = vld [vmem:[#allocation5 + $0x60] sm:$0xf]
        %v2847 = vld [vmem:[#allocation5 + $0x64] sm:$0xf]
        %v2848 = vld [vmem:[#allocation5 + $0x68] sm:$0xf]
        %v2849 = vld [vmem:[#allocation5 + $0x6c] sm:$0xf]
        %v2850 = vld [vmem:[#allocation5 + $0x70] sm:$0xf]
        %v2851 = vld [vmem:[#allocation5 + $0x74] sm:$0xf]
        %v2852 = vld [vmem:[#allocation5 + $0x78] sm:$0xf]
        %v2853 = vld [vmem:[#allocation5 + $0x7c] sm:$0xf]
        %v2854 = vld [vmem:[#allocation5 + $0x80] sm:$0xf]
        %v2855 = vld [vmem:[#allocation5 + $0x84] sm:$0xf]
        %v2856 = vld [vmem:[#allocation5 + $0x88] sm:$0xf]
        %v2857 = vld [vmem:[#allocation5 + $0x8c] sm:$0xf]
        %v2858 = vld [vmem:[#allocation5 + $0x90] sm:$0xf]
        %v2859 = vld [vmem:[#allocation5 + $0x94] sm:$0xf]
        %v2860 = vld [vmem:[#allocation5 + $0x98] sm:$0xf]
        %v2861 = vld [vmem:[#allocation5 + $0x9c] sm:$0xf]
        %v2862 = vld [vmem:[#allocation5 + $0xa0] sm:$0xf]
        %v2863 = vld [vmem:[#allocation5 + $0xa4] sm:$0xf]
        %v2864 = vld [vmem:[#allocation5 + $0xa8] sm:$0xf]
        %v2865 = vld [vmem:[#allocation5 + $0xac] sm:$0xf]
        %v2866 = vld [vmem:[#allocation5 + $0xb0] sm:$0xf]
        %v2867 = vld [vmem:[#allocation5 + $0xb4] sm:$0xf]
        %v2868 = vld [vmem:[#allocation5 + $0xb8] sm:$0xf]
        %v2869 = vld [vmem:[#allocation5 + $0xbc] sm:$0xf]
        %v2870 = vld [vmem:[#allocation5 + $0xc0] sm:$0xf]
        %v2871 = vld [vmem:[#allocation5 + $0xc4] sm:$0xf]
        %v2872 = vld [vmem:[#allocation5 + $0xc8] sm:$0xf]
        %v2873 = vld [vmem:[#allocation5 + $0xcc] sm:$0xf]
        %v2874 = vld [vmem:[#allocation5 + $0xd0] sm:$0xf]
        %v2875 = vld [vmem:[#allocation5 + $0xd4] sm:$0xf]
        %v2876 = vld [vmem:[#allocation5 + $0xd8] sm:$0xf]
        %v2877 = vld [vmem:[#allocation5 + $0xdc] sm:$0xf]
        %v2878 = vld [vmem:[#allocation5 + $0xe0] sm:$0xf]
        %v2879 = vld [vmem:[#allocation5 + $0xe4] sm:$0xf]
        %v2880 = vld [vmem:[#allocation5 + $0xe8] sm:$0xf]
        %v2881 = vld [vmem:[#allocation5 + $0xec] sm:$0xf]
        %v2882 = vld [vmem:[#allocation5 + $0xf0] sm:$0xf]
        %v2883 = vld [vmem:[#allocation5 + $0xf4] sm:$0xf]
        %v2884 = vld [vmem:[#allocation5 + $0xf8] sm:$0xf]
        %v2885 = vld [vmem:[#allocation5 + $0xfc] sm:$0xf]
        %v2886 = vld [vmem:[%s6] sm:$0x1]
        %v2888 = vlaneseq
        %v2889 = vshrl.u32 %v2888, 7
        %v2890 = vsub.s32 0, %v2889
        %v2891 = vrot.slane %v2886, %v2890
        %v2957 = vunpack.c.l.b16 %v2822
        %v2958 = vunpack.c.l.b16 %v2823
        %v2959 = vunpack.c.l.b16 %v2824
        %v2960 = vunpack.c.l.b16 %v2825
        %v2961 = vunpack.c.l.b16 %v2826
        %v2962 = vunpack.c.l.b16 %v2827
        %v2963 = vunpack.c.l.b16 %v2828
        %v2964 = vunpack.c.l.b16 %v2829
        %v2965 = vunpack.c.l.b16 %v2830
        %v2966 = vunpack.c.l.b16 %v2831
        %v2967 = vunpack.c.l.b16 %v2832
        %v2968 = vunpack.c.l.b16 %v2833
        %v2969 = vunpack.c.l.b16 %v2834
        %v2970 = vunpack.c.l.b16 %v2835
        %v2971 = vunpack.c.l.b16 %v2836
        %v2972 = vunpack.c.l.b16 %v2837
        %v2973 = vunpack.c.l.b16 %v2838
        %v2974 = vunpack.c.l.b16 %v2839
        %v2975 = vunpack.c.l.b16 %v2840
        %v2976 = vunpack.c.l.b16 %v2841
        %v2977 = vunpack.c.l.b16 %v2842
        %v2978 = vunpack.c.l.b16 %v2843
        %v2979 = vunpack.c.l.b16 %v2844
        %v2980 = vunpack.c.l.b16 %v2845
        %v2981 = vunpack.c.l.b16 %v2846
        %v2982 = vunpack.c.l.b16 %v2847
        %v2983 = vunpack.c.l.b16 %v2848
        %v2984 = vunpack.c.l.b16 %v2849
        %v2985 = vunpack.c.l.b16 %v2850
        %v2986 = vunpack.c.l.b16 %v2851
        %v2987 = vunpack.c.l.b16 %v2852
        %v2988 = vunpack.c.l.b16 %v2853
        %v2989 = vunpack.c.l.b16 %v2854
        %v2990 = vunpack.c.l.b16 %v2855
        %v2991 = vunpack.c.l.b16 %v2856
        %v2992 = vunpack.c.l.b16 %v2857
        %v2993 = vunpack.c.l.b16 %v2858
        %v2994 = vunpack.c.l.b16 %v2859
        %v2995 = vunpack.c.l.b16 %v2860
        %v2996 = vunpack.c.l.b16 %v2861
        %v2997 = vunpack.c.l.b16 %v2862
        %v2998 = vunpack.c.l.b16 %v2863
        %v2999 = vunpack.c.l.b16 %v2864
        %v3000 = vunpack.c.l.b16 %v2865
        %v3001 = vunpack.c.l.b16 %v2866
        %v3002 = vunpack.c.l.b16 %v2867
        %v3003 = vunpack.c.l.b16 %v2868
        %v3004 = vunpack.c.l.b16 %v2869
        %v3005 = vunpack.c.l.b16 %v2870
        %v3006 = vunpack.c.l.b16 %v2871
        %v3007 = vunpack.c.l.b16 %v2872
        %v3008 = vunpack.c.l.b16 %v2873
        %v3009 = vunpack.c.l.b16 %v2874
        %v3010 = vunpack.c.l.b16 %v2875
        %v3011 = vunpack.c.l.b16 %v2876
        %v3012 = vunpack.c.l.b16 %v2877
        %v3013 = vunpack.c.l.b16 %v2878
        %v3014 = vunpack.c.l.b16 %v2879
        %v3015 = vunpack.c.l.b16 %v2880
        %v3016 = vunpack.c.l.b16 %v2881
        %v3017 = vunpack.c.l.b16 %v2882
        %v3018 = vunpack.c.l.b16 %v2883
        %v3019 = vunpack.c.l.b16 %v2884
        %v3020 = vunpack.c.l.b16 %v2885
        %v3021 = vpack.c.b16 %v2958, %v2957
        %v3022 = vpack.c.b16 %v2960, %v2959
        %v3023 = vpack.c.b16 %v2962, %v2961
        %v3024 = vpack.c.b16 %v2964, %v2963
        %v3025 = vpack.c.b16 %v2966, %v2965
        %v3026 = vpack.c.b16 %v2968, %v2967
        %v3027 = vpack.c.b16 %v2970, %v2969
        %v3028 = vpack.c.b16 %v2972, %v2971
        %v3029 = vpack.c.b16 %v2974, %v2973
        %v3030 = vpack.c.b16 %v2976, %v2975
        %v3031 = vpack.c.b16 %v2978, %v2977
        %v3032 = vpack.c.b16 %v2980, %v2979
        %v3033 = vpack.c.b16 %v2982, %v2981
        %v3034 = vpack.c.b16 %v2984, %v2983
        %v3035 = vpack.c.b16 %v2986, %v2985
        %v3036 = vpack.c.b16 %v2988, %v2987
        %v3037 = vpack.c.b16 %v2990, %v2989
        %v3038 = vpack.c.b16 %v2992, %v2991
        %v3039 = vpack.c.b16 %v2994, %v2993
        %v3040 = vpack.c.b16 %v2996, %v2995
        %v3041 = vpack.c.b16 %v2998, %v2997
        %v3042 = vpack.c.b16 %v3000, %v2999
        %v3043 = vpack.c.b16 %v3002, %v3001
        %v3044 = vpack.c.b16 %v3004, %v3003
        %v3045 = vpack.c.b16 %v3006, %v3005
        %v3046 = vpack.c.b16 %v3008, %v3007
        %v3047 = vpack.c.b16 %v3010, %v3009
        %v3048 = vpack.c.b16 %v3012, %v3011
        %v3049 = vpack.c.b16 %v3014, %v3013
        %v3050 = vpack.c.b16 %v3016, %v3015
        %v3051 = vpack.c.b16 %v3018, %v3017
        %v3052 = vpack.c.b16 %v3020, %v3019
        %3085 = vmatprep.subr.bf16.mxu0 0
        %3086 = vmatpush1.bf16.msra.mxu0 %v3028
        %3087 = vmatprep.subr.bf16.mxu0 0
        %3088 = vmatpush1.bf16.msra.mxu0 %v3027
        %3089 = vmatprep.subr.bf16.mxu0 0
        %3090 = vmatpush1.bf16.msra.mxu0 %v3026
        %3091 = vmatprep.subr.bf16.mxu0 0
        %3092 = vmatpush1.bf16.msra.mxu0 %v3025
        %3093 = vmatprep.subr.bf16.mxu0 0
        %3094 = vmatpush1.bf16.msra.mxu0 %v3024
        %3095 = vmatprep.subr.bf16.mxu0 0
        %3096 = vmatpush1.bf16.msra.mxu0 %v3023
        %3097 = vmatprep.subr.bf16.mxu0 0
        %3098 = vmatpush1.bf16.msra.mxu0 %v3022
        %3099 = vmatprep.subr.bf16.mxu0 0
        %3100 = vmatpush1.bf16.msra.mxu0 %v3021
        %3101 = vmatprep.subr.bf16.mxu0 0
        %3102 = vmatpush2.bf16.msra.mxu0 %v3036
        %3103 = vmatprep.subr.bf16.mxu0 0
        %3104 = vmatpush2.bf16.msra.mxu0 %v3035
        %3105 = vmatprep.subr.bf16.mxu0 0
        %3106 = vmatpush2.bf16.msra.mxu0 %v3034
        %3107 = vmatprep.subr.bf16.mxu0 0
        %3108 = vmatpush2.bf16.msra.mxu0 %v3033
        %3109 = vmatprep.subr.bf16.mxu0 0
        %3110 = vmatpush2.bf16.msra.mxu0 %v3032
        %3111 = vmatprep.subr.bf16.mxu0 0
        %3112 = vmatpush2.bf16.msra.mxu0 %v3031
        %3113 = vmatprep.subr.bf16.mxu0 0
        %3114 = vmatpush2.bf16.msra.mxu0 %v3030
        %3115 = vmatprep.subr.bf16.mxu0 0
        %3116 = vmatpush2.bf16.msra.mxu0 %v3029
        %3117 = vmatprep.mubr.bf16.mxu0 %v2819
        %3118 = vmatmul.mubr.bf16.gmra.mxu0 %v2818
        %v3119 = vpop.f32.mrf.mxu0
        %v3120 = vadd.f32 %v2891, %v3119
        %v3121 = vpop.f32.mrf.mxu0
        %v3122 = vpop.f32.mrf.mxu0
        %v3123 = vpop.f32.mrf.mxu0
        %3124 = vdwg.mxu0
        %3125 = vmatprep.subr.bf16.mxu0 0
        %3126 = vmatpush1.bf16.msra.mxu0 %v3044
        %3127 = vmatprep.subr.bf16.mxu0 0
        %3128 = vmatpush1.bf16.msra.mxu0 %v3043
        %3129 = vmatprep.subr.bf16.mxu0 0
        %3130 = vmatpush1.bf16.msra.mxu0 %v3042
        %3131 = vmatprep.subr.bf16.mxu0 0
        %3132 = vmatpush1.bf16.msra.mxu0 %v3041
        %3133 = vmatprep.subr.bf16.mxu0 0
        %3134 = vmatpush1.bf16.msra.mxu0 %v3040
        %3135 = vmatprep.subr.bf16.mxu0 0
        %3136 = vmatpush1.bf16.msra.mxu0 %v3039
        %3137 = vmatprep.subr.bf16.mxu0 0
        %3138 = vmatpush1.bf16.msra.mxu0 %v3038
        %3139 = vmatprep.subr.bf16.mxu0 0
        %3140 = vmatpush1.bf16.msra.mxu0 %v3037
        %3141 = vmatprep.subr.bf16.mxu0 0
        %3142 = vmatpush2.bf16.msra.mxu0 %v3052
        %3143 = vmatprep.subr.bf16.mxu0 0
        %3144 = vmatpush2.bf16.msra.mxu0 %v3051
        %3145 = vmatprep.subr.bf16.mxu0 0
        %3146 = vmatpush2.bf16.msra.mxu0 %v3050
        %3147 = vmatprep.subr.bf16.mxu0 0
        %3148 = vmatpush2.bf16.msra.mxu0 %v3049
        %3149 = vmatprep.subr.bf16.mxu0 0
        %3150 = vmatpush2.bf16.msra.mxu0 %v3048
        %3151 = vmatprep.subr.bf16.mxu0 0
        %3152 = vmatpush2.bf16.msra.mxu0 %v3047
        %3153 = vmatprep.subr.bf16.mxu0 0
        %3154 = vmatpush2.bf16.msra.mxu0 %v3046
        %3155 = vmatprep.subr.bf16.mxu0 0
        %3156 = vmatpush2.bf16.msra.mxu0 %v3045
        %3157 = vmatprep.mubr.bf16.mxu0 %v2821
        %3158 = vmatmul.mubr.bf16.gmra.mxu0 %v2820
        %v3159 = vpop.f32.mrf.mxu0
        %v3160 = vadd.f32 %v3120, %v3159
        %v3161 = vpop.f32.mrf.mxu0
        %v3162 = vpop.f32.mrf.mxu0
        %v3163 = vpop.f32.mrf.mxu0
        %3164 = vdwg.mxu0
        %3165 = vst [vmem:[%s301] sm:$0xff] %v3160
        %s3166 = sand.u32 %s183, 1
        %s3167 = scalar_lea.sflag [#allocation4], %s3166
        %s3168 = sand.u32 %s183, 1
        %s3169 = smul.addr %s3168, 8
        %s3170 = scalar_lea.vmem [#allocation7], %s3169
        // Predicated region
        $region57: #{mymodel_forward.1} parent=47 // pred_check
          %p3171 = pneg %p193
        $region58: #{mymodel_forward.1} parent=47 // pred_check_branch
          %3173 = sbr.rel (%p3171) target = $region60
        $region59: #{mymodel_forward.1} parent=47 // pred_region
          %s3175 = ssub.s32 128, 128
          %3176 = vsyncadd %s3167, %s3175
          %s3177 = smul.addr %s23, 128
          %s3178 = scalar_lea.hbm %s7, %s3177
          %s3180 = sshll.u32 %s3170, 4
          %s3181 = int_to_ptr.vmem [resolvable:$true] %s3180
          %3183 = dma.vmem_to_hbm [thread:$0]  %s3181, 128, %s3178, %s3167
        $region60: #{mymodel_forward.1} parent=47 // pred_fallthru
          _
      $region48: #{mymodel_forward.1} parent=5 // pred_fallthru
        _
      %p3184 = scmp.le.s32.totalorder 2, %s18
      // Predicated region
      $region61: #{mymodel_forward.1} parent=5 // pred_check
        %p3185 = pneg %p3184
      $region62: #{mymodel_forward.1} parent=5 // pred_check_branch
        %3187 = sbr.rel (%p3185) target = $region64
      $region63: #{mymodel_forward.1} parent=5 // pred_region
        %s3188 = ssub.s32 %s18, 2
        // Predicated region
        $region65: #{mymodel_forward.1} parent=63 // pred_check
          %p3189 = pneg %p199
        $region66: #{mymodel_forward.1} parent=63 // pred_check_branch
          %3191 = sbr.rel (%p3189) target = $region68
        $region67: #{mymodel_forward.1} parent=63 // pred_region
          %s3192 = sand.u32 %s184, 1
          %s3193 = scalar_lea.sflag [#allocation4], %s3192
          %s3194 = sand.u32 %s184, 1
          %s3195 = smul.addr %s3194, 8
          %s3196 = scalar_lea.vmem [#allocation7], %s3195
          %3197 = dma.done %s3193, 128
        $region68: #{mymodel_forward.1} parent=63 // pred_fallthru
          _
      $region64: #{mymodel_forward.1} parent=5 // pred_fallthru
        _
    $region6: #{mymodel_forward.1} parent=1 // loop_footer
      %s22 = sadd.s32 1, %s18
    $region7: #{mymodel_forward.1} parent=1 // loop_footer_branch
      %17 = sbr.rel target = $region3
    $region8: #{mymodel_forward.1} parent=1 // loop_exit
      _
    %3198 = vsyncpa [#allocation3], 1
    %s3199 = scalar_lea.sflag [#allocation3], 1
    %3200 = vsyncpa %s3199, 1
    %3201 = vsyncpa [#allocation6], 1
    %3202 = vsyncpa [#allocation4], 1
    %s3203 = scalar_lea.sflag [#allocation4], 1
    %3204 = vsyncpa %s3203, 1

</llo_original>
